<compile_context>
chip_gen: v5e
topology: v5e:2x2
jax: 0.10.0
libtpu: 0.0.40
codegen_flags: <defaults>
</compile_context>

<pallas_src>
from functools import partial

import jax
import jax.numpy as jnp
from jax import lax
from jax.experimental import pallas as pl
from jax.experimental.pallas import tpu as pltpu

EPS = 1e-5  # nn.InstanceNorm3d default eps


def _round_up(x, m):
    return (x + m - 1) // m * m


def _pick_cout_tile(cout):
    """Largest MXU-friendly tile that divides Cout and still yields >=2 tiles."""
    cands = [t for t in (256, 128, 64, 32, 16, 8) if cout % t == 0 and cout // t >= 2]
    return cands[0] if cands else cout


def _vmem_bytes(shape, dtype):
    """Pessimistic VMEM footprint of one tile ((sublane, lane) padded)."""
    it = jnp.dtype(dtype).itemsize
    s = list(shape)
    s[-1] = _round_up(s[-1], 128)
    if len(s) >= 2:
        s[-2] = _round_up(s[-2], 32 // it)   # 8 rows for f32, 16 for bf16
    n = 1
    for d in s:
        n *= d
    return n * it


def conv3d_block_kernel(x_ref, w_ref, b_ref, mask_ref, o_ref, xk_ref, *,
                        tap_offsets, cin, inv_s):
    """Grid point = (sample n, Cout tile co).

    x_ref:    (1, Cin, Le)        zero-padded, flattened sample (compute dtype)
    w_ref:    (Cout_t, 27*Cin)    K-stacked weights (compute dtype)
    b_ref:    (Cout_t, 1)         bias (f32)
    mask_ref: (1, S_pad)          1.0 on true spatial positions, else 0.0
    o_ref:    (1, Cout_t, S_pad)  lane-dense output
    xk_ref:   (27*Cin, S_pad)     VMEM scratch: K-stacked shifted input views
    """
    s_pad = o_ref.shape[2]

    # Stage the 27 shifted tap views once per sample (co == 0); reused by every
    # Cout tile of the same sample (Cout axis is sequential / "arbitrary").
    @pl.when(pl.program_id(1) == 0)
    def _stage():
        for t, off in enumerate(tap_offsets):               # static, unrolled
            xk_ref[t * cin:(t + 1) * cin, :] = x_ref[0, :, off:off + s_pad]

    # Single MXU matmul, K = 27*Cin, accumulation inside the MXU (f32 result).
    acc = jnp.dot(w_ref[...], xk_ref[...], preferred_element_type=jnp.float32)

    # Bias + ReLU.
    z = jnp.maximum(acc + b_ref[...], 0.0)                   # (Cout_t, S_pad) f32

    # InstanceNorm3d over the true spatial positions only (halo lanes masked out),
    # single pass: sum and sum of squares, biased variance.
    mask = mask_ref[...]                                     # (1, S_pad)
    zm = z * mask
    s1 = jnp.sum(zm, axis=1, keepdims=True)                  # (Cout_t, 1)
    s2 = jnp.sum(zm * z, axis=1, keepdims=True)              # mask is 0/1
    mean = s1 * inv_s
    var = s2 * inv_s - mean * mean
    scale = lax.rsqrt(var + EPS)                             # EUP
    shift = -mean * scale
    o_ref[0] = (z * scale + shift).astype(o_ref.dtype)       # one FMA per element


def conv3d_block(x, w, b, *, compute_dtype=jnp.bfloat16, out_dtype=jnp.float32,
                 cout_tile=None):
    """Conv3d(k=3, pad=1) -> ReLU -> InstanceNorm3d(affine=False, eps=1e-5).

    x: (N, Cin, D, H, W);  w: (Cout, Cin, 3, 3, 3);  b: (Cout,)
    Returns (N, Cout, D, H, W) in `out_dtype`.
    """
    N, Cin, D, H, W = x.shape
    Cout = w.shape[0]
    Hp, Wp = H + 2, W + 2
    plane = Hp * Wp
    halo = plane + Wp + 1             # |flat offset| of the (-1,-1,-1) tap
    S = D * H * W                     # norm divisor (true spatial extent)

    # Output lane p <-> padded flat position p + halo;  p = d*plane + h*Wp + w.
    s_out_pad = _round_up(D * plane, 128)
    # Input slab: padded sample at offset 0 + enough trailing zero depth planes so
    # every tap slice [off, off + s_out_pad), off <= 2*halo, stays in bounds.
    d_ext = -(-(s_out_pad + 2 * halo) // plane)       # total depth planes
    Le = d_ext * plane

    # ---- XLA-side prep: ONE materialisation of the activation, in compute dtype.
    xe = jnp.pad(x.astype(compute_dtype),
                 ((0, 0), (0, 0), (1, d_ext - D - 1), (1, 1), (1, 1)))
    xe = xe.reshape(N, Cin, Le)

    # K-stacked weights: row k = t*Cin + c, with t = kd*9 + kh*3 + kw.
    K = 27 * Cin
    w_all = jnp.transpose(w, (0, 2, 3, 4, 1)).reshape(Cout, K).astype(compute_dtype)
    b2 = b.astype(jnp.float32).reshape(Cout, 1)

    # Valid-position mask for the norm statistics (1.0 at p = d*plane + h*Wp + w).
    mask = jnp.pad(jnp.ones((D, H, W), jnp.float32), ((0, 0), (0, 2), (0, 2)))
    mask = jnp.pad(mask.reshape(-1), (0, s_out_pad - D * plane)).reshape(1, s_out_pad)

    tap_offsets = tuple(kd * plane + kh * Wp + kw
                        for kd in range(3) for kh in range(3) for kw in range(3))

    tc = cout_tile if cout_tile is not None else _pick_cout_tile(Cout)
    assert Cout % tc == 0, "cout_tile must divide Cout"
    n_co = Cout // tc

    # VMEM budget derived from the actual block shapes (+ ~50% margin for temps).
    est = (2 * _vmem_bytes((1, Cin, Le), compute_dtype)      # input double buffer
           + 2 * _vmem_bytes((tc, K), compute_dtype)         # weight double buffer
           + 2 * _vmem_bytes((tc, 1), jnp.float32)           # bias
           + 2 * _vmem_bytes((1, s_out_pad), jnp.float32)    # mask
           + 2 * _vmem_bytes((1, tc, s_out_pad), out_dtype)  # output double buffer
           + _vmem_bytes((K, s_out_pad), compute_dtype)      # K-stacked scratch
           + 4 * _vmem_bytes((tc, s_out_pad), jnp.float32))  # acc / z / zm temps
    vmem_limit = int(min(max(est + est // 2 + (2 << 20), 16 << 20), 64 << 20))

    kernel = partial(conv3d_block_kernel, tap_offsets=tap_offsets, cin=Cin,
                     inv_s=1.0 / S)

    out = pl.pallas_call(
        kernel,
        out_shape=jax.ShapeDtypeStruct((N, Cout, s_out_pad), out_dtype),
        grid_spec=pltpu.PrefetchScalarGridSpec(
            num_scalar_prefetch=0,
            grid=(N, n_co),
            in_specs=[
                pl.BlockSpec((1, Cin, Le), lambda n, co: (n, 0, 0)),
                pl.BlockSpec((tc, K), lambda n, co: (co, 0)),
                pl.BlockSpec((tc, 1), lambda n, co: (co, 0)),
                pl.BlockSpec((1, s_out_pad), lambda n, co: (0, 0)),
            ],
            out_specs=pl.BlockSpec((1, tc, s_out_pad), lambda n, co: (n, co, 0)),
            scratch_shapes=[pltpu.VMEM((K, s_out_pad), compute_dtype)],
        ),
        compiler_params=pltpu.CompilerParams(
            # Cout axis is sequential so the per-sample K-stacked scratch staged at
            # co == 0 can be reused by the remaining Cout tiles of that sample.
            dimension_semantics=("parallel", "arbitrary"),
            vmem_limit_bytes=vmem_limit,
        ),
    )(xe, w_all, b2, mask)

    # Trailing-only crop: lane p = d*plane + h*Wp + w -> (d, h, w).
    out = out[:, :, :D * plane].reshape(N, Cout, D, Hp, Wp)
    return out[:, :, :, :H, :W]


def ref_forward(x, w, b):
    """Pure-JAX reference: Conv3d(k=3,p=1) -> ReLU -> InstanceNorm3d (NCDHW, f32)."""
    dn = ("NCDHW", "OIDHW", "NCDHW")
    y = lax.conv_general_dilated(x, w, (1, 1, 1), ((1, 1), (1, 1), (1, 1)),
                                 dimension_numbers=dn) + b.reshape(1, -1, 1, 1, 1)
    z = jnp.maximum(y, 0.0)
    mean = jnp.mean(z, axis=(2, 3, 4), keepdims=True)
    var = jnp.mean((z - mean) ** 2, axis=(2, 3, 4), keepdims=True)
    return (z - mean) * lax.rsqrt(var + EPS)


if __name__ == "__main__":
    N, Cin, Cout, D, H, W = 2, 4, 8, 8, 8, 8

    key = jax.random.PRNGKey(0)
    kx, kw, kb = jax.random.split(key, 3)
    x = jax.random.normal(kx, (N, Cin, D, H, W), dtype=jnp.float32)
    w = jax.random.normal(kw, (Cout, Cin, 3, 3, 3), dtype=jnp.float32) * 0.1
    b = jax.random.normal(kb, (Cout,), dtype=jnp.float32) * 0.1

    ref = jax.block_until_ready(ref_forward(x, w, b))

    # ---- f32 compute path: exact module semantics vs the f32 reference ----
    out_f32 = jax.block_until_ready(
        conv3d_block(x, w, b, compute_dtype=jnp.float32))
    err = float(jnp.max(jnp.abs(out_f32 - ref)))
    if err > 2e-3:
        raise AssertionError(f"f32 path mismatch vs reference: max abs err = {err}")

    # ---- bf16 MXU path (default): compare against the f32 reference evaluated on
    # the same bf16-rounded operands (bf16 products are exact in f32).
    out_bf16 = jax.block_until_ready(
        conv3d_block(x, w, b, compute_dtype=jnp.bfloat16))
    x_r = x.astype(jnp.bfloat16).astype(jnp.float32)
    w_r = w.astype(jnp.bfloat16).astype(jnp.float32)
    ref_bf16 = jax.block_until_ready(ref_forward(x_r, w_r, b))
    err2 = float(jnp.max(jnp.abs(out_bf16 - ref_bf16)))
    if err2 > 2e-3:
        raise AssertionError(f"bf16 path mismatch vs reference: max abs err = {err2}")

    print("KERNEL_OK")
</pallas_src>

<mosaic_0001>
module attributes {stable_mosaic.version = 11 : i64} {
  func.func @conv3d_block_kernel(%arg0: i32, %arg1: i32, %arg2: memref<1x4x1200xf32, #tpu.memory_space<vmem>>, %arg3: memref<8x108xf32, #tpu.memory_space<vmem>>, %arg4: memref<8x1xf32, #tpu.memory_space<vmem>>, %arg5: memref<1x896xf32, #tpu.memory_space<vmem>>, %arg6: memref<1x8x896xf32, #tpu.memory_space<vmem>>, %arg7: memref<108x896xf32, #tpu.memory_space<vmem>>) attributes {dimension_semantics = [#tpu.dimension_semantics<parallel>, #tpu.dimension_semantics<arbitrary>], iteration_bounds = array<i64: 2, 1>, scalar_prefetch = 0 : i64, scratch_operands = 1 : i64, tpu.core_type = #tpu.core_type<tc>, window_params = [{transform_indices = @transform_0, window_bounds = array<i64: 1, 4, 1200>}, {transform_indices = @transform_1, window_bounds = array<i64: 8, 108>}, {transform_indices = @transform_2, window_bounds = array<i64: 8, 1>}, {pipeline_mode = #tpu.pipeline_mode<synchronous>, transform_indices = @transform_3, window_bounds = array<i64: 1, 896>}, {transform_indices = @transform_4, window_bounds = array<i64: 1, 8, 896>}]} {
    %c0_i32 = arith.constant 0 : i32
    %0 = arith.cmpi eq, %arg1, %c0_i32 : i32
    %1 = arith.extui %0 : i1 to i32
    %c0_i32_0 = arith.constant 0 : i32
    %2 = arith.cmpi ne, %1, %c0_i32_0 : i32
    scf.if %2 {
      %c0_18 = arith.constant 0 : index
      %c0_19 = arith.constant 0 : index
      %c0_20 = arith.constant 0 : index
      %38 = vector.load %arg2[%c0_18, %c0_19, %c0_20] : memref<1x4x1200xf32, #tpu.memory_space<vmem>>, vector<1x4x896xf32>
      %39 = vector.shape_cast %38 : vector<1x4x896xf32> to vector<4x896xf32>
      %c0_21 = arith.constant 0 : index
      %c0_22 = arith.constant 0 : index
      %40 = vector.load %arg7[%c0_21, %c0_22] : memref<108x896xf32, #tpu.memory_space<vmem>>, vector<4x896xf32>
      tpu.vector_store %arg7[%c0_21, %c0_22], %39 {strides = array<i32>} : memref<108x896xf32, #tpu.memory_space<vmem>>, vector<4x896xf32>,
      %c0_23 = arith.constant 0 : index
      %c0_24 = arith.constant 0 : index
      %c1 = arith.constant 1 : index
      %41 = vector.load %arg2[%c0_23, %c0_24, %c1] : memref<1x4x1200xf32, #tpu.memory_space<vmem>>, vector<1x4x896xf32>
      %42 = vector.shape_cast %41 : vector<1x4x896xf32> to vector<4x896xf32>
      %c4 = arith.constant 4 : index
      %c0_25 = arith.constant 0 : index
      %43 = vector.load %arg7[%c4, %c0_25] : memref<108x896xf32, #tpu.memory_space<vmem>>, vector<4x896xf32>
      tpu.vector_store %arg7[%c4, %c0_25], %42 {strides = array<i32>} : memref<108x896xf32, #tpu.memory_space<vmem>>, vector<4x896xf32>,
      %c0_26 = arith.constant 0 : index
      %c0_27 = arith.constant 0 : index
      %c2 = arith.constant 2 : index
      %44 = vector.load %arg2[%c0_26, %c0_27, %c2] : memref<1x4x1200xf32, #tpu.memory_space<vmem>>, vector<1x4x896xf32>
      %45 = vector.shape_cast %44 : vector<1x4x896xf32> to vector<4x896xf32>
      %c8 = arith.constant 8 : index
      %c0_28 = arith.constant 0 : index
      %46 = vector.load %arg7[%c8, %c0_28] : memref<108x896xf32, #tpu.memory_space<vmem>>, vector<4x896xf32>
      tpu.vector_store %arg7[%c8, %c0_28], %45 {strides = array<i32>} : memref<108x896xf32, #tpu.memory_space<vmem>>, vector<4x896xf32>,
      %c0_29 = arith.constant 0 : index
      %c0_30 = arith.constant 0 : index
      %c10 = arith.constant 10 : index
      %47 = vector.load %arg2[%c0_29, %c0_30, %c10] : memref<1x4x1200xf32, #tpu.memory_space<vmem>>, vector<1x4x896xf32>
      %48 = vector.shape_cast %47 : vector<1x4x896xf32> to vector<4x896xf32>
      %c12 = arith.constant 12 : index
      %c0_31 = arith.constant 0 : index
      %49 = vector.load %arg7[%c12, %c0_31] : memref<108x896xf32, #tpu.memory_space<vmem>>, vector<4x896xf32>
      tpu.vector_store %arg7[%c12, %c0_31], %48 {strides = array<i32>} : memref<108x896xf32, #tpu.memory_space<vmem>>, vector<4x896xf32>,
      %c0_32 = arith.constant 0 : index
      %c0_33 = arith.constant 0 : index
      %c11 = arith.constant 11 : index
      %50 = vector.load %arg2[%c0_32, %c0_33, %c11] : memref<1x4x1200xf32, #tpu.memory_space<vmem>>, vector<1x4x896xf32>
      %51 = vector.shape_cast %50 : vector<1x4x896xf32> to vector<4x896xf32>
      %c16 = arith.constant 16 : index
      %c0_34 = arith.constant 0 : index
      %52 = vector.load %arg7[%c16, %c0_34] : memref<108x896xf32, #tpu.memory_space<vmem>>, vector<4x896xf32>
      tpu.vector_store %arg7[%c16, %c0_34], %51 {strides = array<i32>} : memref<108x896xf32, #tpu.memory_space<vmem>>, vector<4x896xf32>,
      %c0_35 = arith.constant 0 : index
      %c0_36 = arith.constant 0 : index
      %c12_37 = arith.constant 12 : index
      %53 = vector.load %arg2[%c0_35, %c0_36, %c12_37] : memref<1x4x1200xf32, #tpu.memory_space<vmem>>, vector<1x4x896xf32>
      %54 = vector.shape_cast %53 : vector<1x4x896xf32> to vector<4x896xf32>
      %c20 = arith.constant 20 : index
      %c0_38 = arith.constant 0 : index
      %55 = vector.load %arg7[%c20, %c0_38] : memref<108x896xf32, #tpu.memory_space<vmem>>, vector<4x896xf32>
      tpu.vector_store %arg7[%c20, %c0_38], %54 {strides = array<i32>} : memref<108x896xf32, #tpu.memory_space<vmem>>, vector<4x896xf32>,
      %c0_39 = arith.constant 0 : index
      %c0_40 = arith.constant 0 : index
      %c20_41 = arith.constant 20 : index
      %56 = vector.load %arg2[%c0_39, %c0_40, %c20_41] : memref<1x4x1200xf32, #tpu.memory_space<vmem>>, vector<1x4x896xf32>
      %57 = vector.shape_cast %56 : vector<1x4x896xf32> to vector<4x896xf32>
      %c24 = arith.constant 24 : index
      %c0_42 = arith.constant 0 : index
      %58 = vector.load %arg7[%c24, %c0_42] : memref<108x896xf32, #tpu.memory_space<vmem>>, vector<4x896xf32>
      tpu.vector_store %arg7[%c24, %c0_42], %57 {strides = array<i32>} : memref<108x896xf32, #tpu.memory_space<vmem>>, vector<4x896xf32>,
      %c0_43 = arith.constant 0 : index
      %c0_44 = arith.constant 0 : index
      %c21 = arith.constant 21 : index
      %59 = vector.load %arg2[%c0_43, %c0_44, %c21] : memref<1x4x1200xf32, #tpu.memory_space<vmem>>, vector<1x4x896xf32>
      %60 = vector.shape_cast %59 : vector<1x4x896xf32> to vector<4x896xf32>
      %c28 = arith.constant 28 : index
      %c0_45 = arith.constant 0 : index
      %61 = vector.load %arg7[%c28, %c0_45] : memref<108x896xf32, #tpu.memory_space<vmem>>, vector<4x896xf32>
      tpu.vector_store %arg7[%c28, %c0_45], %60 {strides = array<i32>} : memref<108x896xf32, #tpu.memory_space<vmem>>, vector<4x896xf32>,
      %c0_46 = arith.constant 0 : index
      %c0_47 = arith.constant 0 : index
      %c22 = arith.constant 22 : index
      %62 = vector.load %arg2[%c0_46, %c0_47, %c22] : memref<1x4x1200xf32, #tpu.memory_space<vmem>>, vector<1x4x896xf32>
      %63 = vector.shape_cast %62 : vector<1x4x896xf32> to vector<4x896xf32>
      %c32 = arith.constant 32 : index
      %c0_48 = arith.constant 0 : index
      %64 = vector.load %arg7[%c32, %c0_48] : memref<108x896xf32, #tpu.memory_space<vmem>>, vector<4x896xf32>
      tpu.vector_store %arg7[%c32, %c0_48], %63 {strides = array<i32>} : memref<108x896xf32, #tpu.memory_space<vmem>>, vector<4x896xf32>,
      %c0_49 = arith.constant 0 : index
      %c0_50 = arith.constant 0 : index
      %c100 = arith.constant 100 : index
      %65 = vector.load %arg2[%c0_49, %c0_50, %c100] : memref<1x4x1200xf32, #tpu.memory_space<vmem>>, vector<1x4x896xf32>
      %66 = vector.shape_cast %65 : vector<1x4x896xf32> to vector<4x896xf32>
      %c36 = arith.constant 36 : index
      %c0_51 = arith.constant 0 : index
      %67 = vector.load %arg7[%c36, %c0_51] : memref<108x896xf32, #tpu.memory_space<vmem>>, vector<4x896xf32>
      tpu.vector_store %arg7[%c36, %c0_51], %66 {strides = array<i32>} : memref<108x896xf32, #tpu.memory_space<vmem>>, vector<4x896xf32>,
      %c0_52 = arith.constant 0 : index
      %c0_53 = arith.constant 0 : index
      %c101 = arith.constant 101 : index
      %68 = vector.load %arg2[%c0_52, %c0_53, %c101] : memref<1x4x1200xf32, #tpu.memory_space<vmem>>, vector<1x4x896xf32>
      %69 = vector.shape_cast %68 : vector<1x4x896xf32> to vector<4x896xf32>
      %c40 = arith.constant 40 : index
      %c0_54 = arith.constant 0 : index
      %70 = vector.load %arg7[%c40, %c0_54] : memref<108x896xf32, #tpu.memory_space<vmem>>, vector<4x896xf32>
      tpu.vector_store %arg7[%c40, %c0_54], %69 {strides = array<i32>} : memref<108x896xf32, #tpu.memory_space<vmem>>, vector<4x896xf32>,
      %c0_55 = arith.constant 0 : index
      %c0_56 = arith.constant 0 : index
      %c102 = arith.constant 102 : index
      %71 = vector.load %arg2[%c0_55, %c0_56, %c102] : memref<1x4x1200xf32, #tpu.memory_space<vmem>>, vector<1x4x896xf32>
      %72 = vector.shape_cast %71 : vector<1x4x896xf32> to vector<4x896xf32>
      %c44 = arith.constant 44 : index
      %c0_57 = arith.constant 0 : index
      %73 = vector.load %arg7[%c44, %c0_57] : memref<108x896xf32, #tpu.memory_space<vmem>>, vector<4x896xf32>
      tpu.vector_store %arg7[%c44, %c0_57], %72 {strides = array<i32>} : memref<108x896xf32, #tpu.memory_space<vmem>>, vector<4x896xf32>,
      %c0_58 = arith.constant 0 : index
      %c0_59 = arith.constant 0 : index
      %c110 = arith.constant 110 : index
      %74 = vector.load %arg2[%c0_58, %c0_59, %c110] : memref<1x4x1200xf32, #tpu.memory_space<vmem>>, vector<1x4x896xf32>
      %75 = vector.shape_cast %74 : vector<1x4x896xf32> to vector<4x896xf32>
      %c48 = arith.constant 48 : index
      %c0_60 = arith.constant 0 : index
      %76 = vector.load %arg7[%c48, %c0_60] : memref<108x896xf32, #tpu.memory_space<vmem>>, vector<4x896xf32>
      tpu.vector_store %arg7[%c48, %c0_60], %75 {strides = array<i32>} : memref<108x896xf32, #tpu.memory_space<vmem>>, vector<4x896xf32>,
      %c0_61 = arith.constant 0 : index
      %c0_62 = arith.constant 0 : index
      %c111 = arith.constant 111 : index
      %77 = vector.load %arg2[%c0_61, %c0_62, %c111] : memref<1x4x1200xf32, #tpu.memory_space<vmem>>, vector<1x4x896xf32>
      %78 = vector.shape_cast %77 : vector<1x4x896xf32> to vector<4x896xf32>
      %c52 = arith.constant 52 : index
      %c0_63 = arith.constant 0 : index
      %79 = vector.load %arg7[%c52, %c0_63] : memref<108x896xf32, #tpu.memory_space<vmem>>, vector<4x896xf32>
      tpu.vector_store %arg7[%c52, %c0_63], %78 {strides = array<i32>} : memref<108x896xf32, #tpu.memory_space<vmem>>, vector<4x896xf32>,
      %c0_64 = arith.constant 0 : index
      %c0_65 = arith.constant 0 : index
      %c112 = arith.constant 112 : index
      %80 = vector.load %arg2[%c0_64, %c0_65, %c112] : memref<1x4x1200xf32, #tpu.memory_space<vmem>>, vector<1x4x896xf32>
      %81 = vector.shape_cast %80 : vector<1x4x896xf32> to vector<4x896xf32>
      %c56 = arith.constant 56 : index
      %c0_66 = arith.constant 0 : index
      %82 = vector.load %arg7[%c56, %c0_66] : memref<108x896xf32, #tpu.memory_space<vmem>>, vector<4x896xf32>
      tpu.vector_store %arg7[%c56, %c0_66], %81 {strides = array<i32>} : memref<108x896xf32, #tpu.memory_space<vmem>>, vector<4x896xf32>,
      %c0_67 = arith.constant 0 : index
      %c0_68 = arith.constant 0 : index
      %c120 = arith.constant 120 : index
      %83 = vector.load %arg2[%c0_67, %c0_68, %c120] : memref<1x4x1200xf32, #tpu.memory_space<vmem>>, vector<1x4x896xf32>
      %84 = vector.shape_cast %83 : vector<1x4x896xf32> to vector<4x896xf32>
      %c60 = arith.constant 60 : index
      %c0_69 = arith.constant 0 : index
      %85 = vector.load %arg7[%c60, %c0_69] : memref<108x896xf32, #tpu.memory_space<vmem>>, vector<4x896xf32>
      tpu.vector_store %arg7[%c60, %c0_69], %84 {strides = array<i32>} : memref<108x896xf32, #tpu.memory_space<vmem>>, vector<4x896xf32>,
      %c0_70 = arith.constant 0 : index
      %c0_71 = arith.constant 0 : index
      %c121 = arith.constant 121 : index
      %86 = vector.load %arg2[%c0_70, %c0_71, %c121] : memref<1x4x1200xf32, #tpu.memory_space<vmem>>, vector<1x4x896xf32>
      %87 = vector.shape_cast %86 : vector<1x4x896xf32> to vector<4x896xf32>
      %c64 = arith.constant 64 : index
      %c0_72 = arith.constant 0 : index
      %88 = vector.load %arg7[%c64, %c0_72] : memref<108x896xf32, #tpu.memory_space<vmem>>, vector<4x896xf32>
      tpu.vector_store %arg7[%c64, %c0_72], %87 {strides = array<i32>} : memref<108x896xf32, #tpu.memory_space<vmem>>, vector<4x896xf32>,
      %c0_73 = arith.constant 0 : index
      %c0_74 = arith.constant 0 : index
      %c122 = arith.constant 122 : index
      %89 = vector.load %arg2[%c0_73, %c0_74, %c122] : memref<1x4x1200xf32, #tpu.memory_space<vmem>>, vector<1x4x896xf32>
      %90 = vector.shape_cast %89 : vector<1x4x896xf32> to vector<4x896xf32>
      %c68 = arith.constant 68 : index
      %c0_75 = arith.constant 0 : index
      %91 = vector.load %arg7[%c68, %c0_75] : memref<108x896xf32, #tpu.memory_space<vmem>>, vector<4x896xf32>
      tpu.vector_store %arg7[%c68, %c0_75], %90 {strides = array<i32>} : memref<108x896xf32, #tpu.memory_space<vmem>>, vector<4x896xf32>,
      %c0_76 = arith.constant 0 : index
      %c0_77 = arith.constant 0 : index
      %c200 = arith.constant 200 : index
      %92 = vector.load %arg2[%c0_76, %c0_77, %c200] : memref<1x4x1200xf32, #tpu.memory_space<vmem>>, vector<1x4x896xf32>
      %93 = vector.shape_cast %92 : vector<1x4x896xf32> to vector<4x896xf32>
      %c72 = arith.constant 72 : index
      %c0_78 = arith.constant 0 : index
      %94 = vector.load %arg7[%c72, %c0_78] : memref<108x896xf32, #tpu.memory_space<vmem>>, vector<4x896xf32>
      tpu.vector_store %arg7[%c72, %c0_78], %93 {strides = array<i32>} : memref<108x896xf32, #tpu.memory_space<vmem>>, vector<4x896xf32>,
      %c0_79 = arith.constant 0 : index
      %c0_80 = arith.constant 0 : index
      %c201 = arith.constant 201 : index
      %95 = vector.load %arg2[%c0_79, %c0_80, %c201] : memref<1x4x1200xf32, #tpu.memory_space<vmem>>, vector<1x4x896xf32>
      %96 = vector.shape_cast %95 : vector<1x4x896xf32> to vector<4x896xf32>
      %c76 = arith.constant 76 : index
      %c0_81 = arith.constant 0 : index
      %97 = vector.load %arg7[%c76, %c0_81] : memref<108x896xf32, #tpu.memory_space<vmem>>, vector<4x896xf32>
      tpu.vector_store %arg7[%c76, %c0_81], %96 {strides = array<i32>} : memref<108x896xf32, #tpu.memory_space<vmem>>, vector<4x896xf32>,
      %c0_82 = arith.constant 0 : index
      %c0_83 = arith.constant 0 : index
      %c202 = arith.constant 202 : index
      %98 = vector.load %arg2[%c0_82, %c0_83, %c202] : memref<1x4x1200xf32, #tpu.memory_space<vmem>>, vector<1x4x896xf32>
      %99 = vector.shape_cast %98 : vector<1x4x896xf32> to vector<4x896xf32>
      %c80 = arith.constant 80 : index
      %c0_84 = arith.constant 0 : index
      %100 = vector.load %arg7[%c80, %c0_84] : memref<108x896xf32, #tpu.memory_space<vmem>>, vector<4x896xf32>
      tpu.vector_store %arg7[%c80, %c0_84], %99 {strides = array<i32>} : memref<108x896xf32, #tpu.memory_space<vmem>>, vector<4x896xf32>,
      %c0_85 = arith.constant 0 : index
      %c0_86 = arith.constant 0 : index
      %c210 = arith.constant 210 : index
      %101 = vector.load %arg2[%c0_85, %c0_86, %c210] : memref<1x4x1200xf32, #tpu.memory_space<vmem>>, vector<1x4x896xf32>
      %102 = vector.shape_cast %101 : vector<1x4x896xf32> to vector<4x896xf32>
      %c84 = arith.constant 84 : index
      %c0_87 = arith.constant 0 : index
      %103 = vector.load %arg7[%c84, %c0_87] : memref<108x896xf32, #tpu.memory_space<vmem>>, vector<4x896xf32>
      tpu.vector_store %arg7[%c84, %c0_87], %102 {strides = array<i32>} : memref<108x896xf32, #tpu.memory_space<vmem>>, vector<4x896xf32>,
      %c0_88 = arith.constant 0 : index
      %c0_89 = arith.constant 0 : index
      %c211 = arith.constant 211 : index
      %104 = vector.load %arg2[%c0_88, %c0_89, %c211] : memref<1x4x1200xf32, #tpu.memory_space<vmem>>, vector<1x4x896xf32>
      %105 = vector.shape_cast %104 : vector<1x4x896xf32> to vector<4x896xf32>
      %c88 = arith.constant 88 : index
      %c0_90 = arith.constant 0 : index
      %106 = vector.load %arg7[%c88, %c0_90] : memref<108x896xf32, #tpu.memory_space<vmem>>, vector<4x896xf32>
      tpu.vector_store %arg7[%c88, %c0_90], %105 {strides = array<i32>} : memref<108x896xf32, #tpu.memory_space<vmem>>, vector<4x896xf32>,
      %c0_91 = arith.constant 0 : index
      %c0_92 = arith.constant 0 : index
      %c212 = arith.constant 212 : index
      %107 = vector.load %arg2[%c0_91, %c0_92, %c212] : memref<1x4x1200xf32, #tpu.memory_space<vmem>>, vector<1x4x896xf32>
      %108 = vector.shape_cast %107 : vector<1x4x896xf32> to vector<4x896xf32>
      %c92 = arith.constant 92 : index
      %c0_93 = arith.constant 0 : index
      %109 = vector.load %arg7[%c92, %c0_93] : memref<108x896xf32, #tpu.memory_space<vmem>>, vector<4x896xf32>
      tpu.vector_store %arg7[%c92, %c0_93], %108 {strides = array<i32>} : memref<108x896xf32, #tpu.memory_space<vmem>>, vector<4x896xf32>,
      %c0_94 = arith.constant 0 : index
      %c0_95 = arith.constant 0 : index
      %c220 = arith.constant 220 : index
      %110 = vector.load %arg2[%c0_94, %c0_95, %c220] : memref<1x4x1200xf32, #tpu.memory_space<vmem>>, vector<1x4x896xf32>
      %111 = vector.shape_cast %110 : vector<1x4x896xf32> to vector<4x896xf32>
      %c96 = arith.constant 96 : index
      %c0_96 = arith.constant 0 : index
      %112 = vector.load %arg7[%c96, %c0_96] : memref<108x896xf32, #tpu.memory_space<vmem>>, vector<4x896xf32>
      tpu.vector_store %arg7[%c96, %c0_96], %111 {strides = array<i32>} : memref<108x896xf32, #tpu.memory_space<vmem>>, vector<4x896xf32>,
      %c0_97 = arith.constant 0 : index
      %c0_98 = arith.constant 0 : index
      %c221 = arith.constant 221 : index
      %113 = vector.load %arg2[%c0_97, %c0_98, %c221] : memref<1x4x1200xf32, #tpu.memory_space<vmem>>, vector<1x4x896xf32>
      %114 = vector.shape_cast %113 : vector<1x4x896xf32> to vector<4x896xf32>
      %c100_99 = arith.constant 100 : index
      %c0_100 = arith.constant 0 : index
      %115 = vector.load %arg7[%c100_99, %c0_100] : memref<108x896xf32, #tpu.memory_space<vmem>>, vector<4x896xf32>
      tpu.vector_store %arg7[%c100_99, %c0_100], %114 {strides = array<i32>} : memref<108x896xf32, #tpu.memory_space<vmem>>, vector<4x896xf32>,
      %c0_101 = arith.constant 0 : index
      %c0_102 = arith.constant 0 : index
      %c222 = arith.constant 222 : index
      %116 = vector.load %arg2[%c0_101, %c0_102, %c222] : memref<1x4x1200xf32, #tpu.memory_space<vmem>>, vector<1x4x896xf32>
      %117 = vector.shape_cast %116 : vector<1x4x896xf32> to vector<4x896xf32>
      %c104 = arith.constant 104 : index
      %c0_103 = arith.constant 0 : index
      %118 = vector.load %arg7[%c104, %c0_103] : memref<108x896xf32, #tpu.memory_space<vmem>>, vector<4x896xf32>
      tpu.vector_store %arg7[%c104, %c0_103], %117 {strides = array<i32>} : memref<108x896xf32, #tpu.memory_space<vmem>>, vector<4x896xf32>,
    } else {
    }
    %c0 = arith.constant 0 : index
    %c0_1 = arith.constant 0 : index
    %3 = vector.load %arg3[%c0, %c0_1] : memref<8x108xf32, #tpu.memory_space<vmem>>, vector<8x108xf32>
    %c0_2 = arith.constant 0 : index
    %c0_3 = arith.constant 0 : index
    %4 = vector.load %arg7[%c0_2, %c0_3] : memref<108x896xf32, #tpu.memory_space<vmem>>, vector<108x896xf32>
    %cst = arith.constant dense<0.000000e+00> : vector<8x896xf32>
    %5 = tpu.matmul %3, %4, %cst {dimension_numbers = #tpu.dot_dimension_numbers<[1], [0], [0], [1], [0, 0, 1, 1], [], []>} : vector<8x108xf32>, vector<108x896xf32>, vector<8x896xf32> -> vector<8x896xf32>
    %c0_4 = arith.constant 0 : index
    %c0_5 = arith.constant 0 : index
    %6 = vector.load %arg4[%c0_4, %c0_5] : memref<8x1xf32, #tpu.memory_space<vmem>>, vector<8x1xf32>
    %7 = vector.broadcast %6 : vector<8x1xf32> to vector<8x896xf32>
    %8 = arith.addf %5, %7 : vector<8x896xf32>
    %cst_6 = arith.constant 0.000000e+00 : f32
    %9 = vector.broadcast %cst_6 : f32 to vector<8x896xf32>
    %10 = arith.maximumf %8, %9 : vector<8x896xf32>
    %c0_7 = arith.constant 0 : index
    %c0_8 = arith.constant 0 : index
    %11 = vector.load %arg5[%c0_7, %c0_8] : memref<1x896xf32, #tpu.memory_space<vmem>>, vector<1x896xf32>
    %12 = vector.broadcast %11 : vector<1x896xf32> to vector<8x896xf32>
    %13 = arith.mulf %10, %12 : vector<8x896xf32>
    %cst_9 = arith.constant dense<0.000000e+00> : vector<8xf32>
    %14 = vector.multi_reduction <add>, %13, %cst_9 [1] : vector<8x896xf32> to vector<8xf32>
    %15 = vector.shape_cast %14 : vector<8xf32> to vector<8x1xf32>
    %16 = arith.mulf %13, %10 : vector<8x896xf32>
    %cst_10 = arith.constant dense<0.000000e+00> : vector<8xf32>
    %17 = vector.multi_reduction <add>, %16, %cst_10 [1] : vector<8x896xf32> to vector<8xf32>
    %18 = vector.shape_cast %17 : vector<8xf32> to vector<8x1xf32>
    %cst_11 = arith.constant 0.001953125 : f32
    %19 = vector.broadcast %cst_11 : f32 to vector<8x1xf32>
    %20 = arith.mulf %15, %19 : vector<8x1xf32>
    %cst_12 = arith.constant 0.001953125 : f32
    %21 = vector.broadcast %cst_12 : f32 to vector<8x1xf32>
    %22 = arith.mulf %18, %21 : vector<8x1xf32>
    %23 = arith.mulf %20, %20 : vector<8x1xf32>
    %24 = arith.subf %22, %23 : vector<8x1xf32>
    %cst_13 = arith.constant 9.99999974E-6 : f32
    %25 = vector.broadcast %cst_13 : f32 to vector<8x1xf32>
    %26 = arith.addf %24, %25 : vector<8x1xf32>
    %27 = math.rsqrt %26 : vector<8x1xf32>
    %cst_14 = arith.constant 0.000000e+00 : f32
    %28 = vector.broadcast %cst_14 : f32 to vector<8x1xf32>
    %29 = arith.subf %28, %20 : vector<8x1xf32>
    %30 = arith.mulf %29, %27 : vector<8x1xf32>
    %31 = vector.broadcast %27 : vector<8x1xf32> to vector<8x896xf32>
    %32 = arith.mulf %10, %31 : vector<8x896xf32>
    %33 = vector.broadcast %30 : vector<8x1xf32> to vector<8x896xf32>
    %34 = arith.addf %32, %33 : vector<8x896xf32>
    %c0_15 = arith.constant 0 : index
    %c0_16 = arith.constant 0 : index
    %c0_17 = arith.constant 0 : index
    %35 = vector.load %arg6[%c0_15, %c0_16, %c0_17] : memref<1x8x896xf32, #tpu.memory_space<vmem>>, vector<1x8x896xf32>
    %36 = vector.shape_cast %35 : vector<1x8x896xf32> to vector<8x896xf32>
    %37 = vector.shape_cast %34 : vector<8x896xf32> to vector<1x8x896xf32>
    tpu.vector_store %arg6[%c0_15, %c0_16, %c0_17], %37 {strides = array<i32>} : memref<1x8x896xf32, #tpu.memory_space<vmem>>, vector<1x8x896xf32>,
    return
  }
  func.func @transform_0(%arg0: i32, %arg1: i32) -> (i32, i32, i32) {
    %c0_i32 = arith.constant 0 : i32
    %c0_i32_0 = arith.constant 0 : i32
    %c0_i32_1 = arith.constant 0 : i32
    return %arg0, %c0_i32, %c0_i32_0 : i32, i32, i32
  }
  func.func @transform_1(%arg0: i32, %arg1: i32) -> (i32, i32) {
    %c0_i32 = arith.constant 0 : i32
    %c0_i32_0 = arith.constant 0 : i32
    return %arg1, %c0_i32 : i32, i32
  }
  func.func @transform_2(%arg0: i32, %arg1: i32) -> (i32, i32) {
    %c0_i32 = arith.constant 0 : i32
    %c0_i32_0 = arith.constant 0 : i32
    return %arg1, %c0_i32 : i32, i32
  }
  func.func @transform_3(%arg0: i32, %arg1: i32) -> (i32, i32) {
    %c0_i32 = arith.constant 0 : i32
    %c0_i32_0 = arith.constant 0 : i32
    %c0_i32_1 = arith.constant 0 : i32
    return %c0_i32, %c0_i32_0 : i32, i32
  }
  func.func @transform_4(%arg0: i32, %arg1: i32) -> (i32, i32, i32) {
    %c0_i32 = arith.constant 0 : i32
    %c0_i32_0 = arith.constant 0 : i32
    return %arg0, %arg1, %c0_i32 : i32, i32, i32
  }
}

</mosaic_0001>

<llo_original>
// kernel: tpu_custom_call.1
$region0: #{tpu_custom_call.1}
  #allocation0 [shape = 'u32[]', space=smem, size = 0x4, offset = 0x4, fixed_abs, tag = 'smem constant byte address 0x4 - core index']
  #allocation1 [shape = 'u32[72,128]{1,0:T(1,128)}', space=vmem, size = 0x9000, scoped, tag = 'internal scratch']
  #allocation2 [shape = 'f32[108,896]{1,0:T(8,128)}', space=vmem, size = 0x62000, scoped, tag = 'scratch operand']
  %s0 = inlined_call_operand.hbm [shape: f32[2,4,1200], index: 0, kind: input, shape index: {}]
  %s1 = inlined_call_operand.vmem [shape: f32[8,108], index: 1, kind: input, shape index: {}]
  %s2 = inlined_call_operand.vmem [shape: f32[8,1], index: 2, kind: input, shape index: {}]
  %s3 = inlined_call_operand.hbm [shape: f32[1,896], index: 3, kind: input, shape index: {}]
  %s4 = inlined_call_operand.hbm [shape: f32[2,8,896], index: 4, kind: output, shape index: {}]
  %s5 = sld [smem:[#allocation0]]
  $region61: #{tpu_custom_call.1} parent=0
    _
  %s7 = ssub.s32 1, %s5
  %s8 = scalar_select 0, %s7, %s5
  $region1: #{tpu_custom_call.1} parent=0
    #allocation3 [shape = 'u8[40960]{0}', space=vmem, size = 0xa000, scoped, tag = 'input window, operand 0']
    #allocation4 [shape = 's32[2]{0}', space=sflag, size = 0x8, scoped, tag = 'scoped memory for tpu_custom_call.1']
    #allocation5 [shape = 's32[2]{0}', space=sflag, size = 0x8, scoped, tag = 'scoped memory for tpu_custom_call.1']
    #allocation6 [shape = 'u8[3584]{0}', space=vmem, size = 0x1000, scoped, tag = 'input window, operand 3, single buffered']
    #allocation7 [shape = 's32[1]{0}', space=sflag, size = 0x4, scoped, tag = 'scoped memory for tpu_custom_call.1']
    #allocation8 [shape = 'u8[57344]{0}', space=vmem, size = 0xe000, scoped, tag = 'output window, operand 0']
    %9 = vsyncpa [#allocation4], 0
    %s10 = scalar_lea.sflag [#allocation4], 1
    %11 = vsyncpa %s10, 0
    %12 = vsyncpa [#allocation7], 0
    %13 = vsyncpa [#allocation5], 0
    %s14 = scalar_lea.sflag [#allocation5], 1
    %15 = vsyncpa %s14, 0
    loop: start=0, step=1, limit=4
    $region2: #{tpu_custom_call.1} parent=1 // loop_pre_header
      _
    $region3: #{tpu_custom_call.1} parent=1 // loop_header
      %s17 = sphi 0, %s21
      %p18 = scmp.ge.s32.totalorder %s17, 4
      %s24 = sphi 0, %s36
      %s25 = sphi 0, %s32
      %s26 = sphi 0, %s24
      %s27 = sphi 0, %s25
      %s28 = sphi 0, %s26
      %s29 = sphi 0, %s27
      %s39 = sphi 0, %s41
      %s42 = sphi 0, %s39
      %s43 = sphi 0, %s42
      %s59 = sphi 0, %s43
      %s65 = sphi 0, %s67
      %s68 = sphi 0, %s65
      %s69 = sphi 0, %s68
      %s85 = sphi 0, %s69
      %s91 = sphi 0, %s93
      %s94 = sphi 0, %s91
      %s95 = sphi 0, %s94
      %s111 = sphi 0, %s95
      %s115 = sphi 0, %s115
      %s117 = sphi 0, %s115
      %s118 = sphi 0, %s117
      %s132 = sphi 0, %s118
      %s140 = sphi 0, %s142
      %s143 = sphi 0, %s140
      %s144 = sphi 0, %s143
      %s160 = sphi 0, %s144
    $region4: #{tpu_custom_call.1} parent=1 // loop_header_branch
      %20 = sbr.rel (%p18) target = $region8
    $region5: #{tpu_custom_call.1} parent=1 // loop_body
      %s22 = ssub.s32 %s17, 1
      %s23 = ssub.s32 %s17, 2
      %s30 = sadd.s32 1, %s25
      %p31 = scmp.ge.s32.totalorder %s30, 1
      %s32 = scalar_select %p31, 0, %s30
      %s33 = sadd.s32 1, %s24
      %s34 = scalar_select %p31, %s33, %s24
      %p35 = scmp.ge.s32.totalorder %s34, 2
      %s36 = scalar_select %p35, 0, %s34
      %s37 = ssub.s32 %s24, %s36
      %p38 = scmp.eq.s32.totalorder %s37, 0
      %s40 = sadd.s32 %s39, 1
      %s41 = scalar_select %p38, %s39, %s40
      %p44 = pneg %p38
      %p45 = scmp.eq.s32.totalorder %s17, 1
      %p46 = por %p44, %p45
      %p47 = scmp.ne.s32.totalorder %s39, %s42
      %p48 = scmp.eq.s32.totalorder %s17, 0
      %p49 = por %p47, %p48
      %p50 = scmp.ne.s32.totalorder %s39, %s42
      %p51 = scmp.eq.s32.totalorder %s22, 1
      %p52 = por %p50, %p51
      %p53 = scmp.ne.s32.totalorder %s42, %s43
      %p54 = scmp.eq.s32.totalorder %s22, 0
      %p55 = por %p53, %p54
      %p56 = scmp.ne.s32.totalorder %s42, %s43
      %p57 = scmp.eq.s32.totalorder %s23, 1
      %p58 = por %p56, %p57
      %p60 = scmp.ne.s32.totalorder %s43, %s59
      %p61 = scmp.eq.s32.totalorder %s23, 0
      %p62 = por %p60, %p61
      %s63 = ssub.s32 %s25, %s32
      %p64 = scmp.eq.s32.totalorder %s63, 0
      %s66 = sadd.s32 %s65, 1
      %s67 = scalar_select %p64, %s65, %s66
      %p70 = pneg %p64
      %p71 = scmp.eq.s32.totalorder %s17, 1
      %p72 = por %p70, %p71
      %p73 = scmp.ne.s32.totalorder %s65, %s68
      %p74 = scmp.eq.s32.totalorder %s17, 0
      %p75 = por %p73, %p74
      %p76 = scmp.ne.s32.totalorder %s65, %s68
      %p77 = scmp.eq.s32.totalorder %s22, 1
      %p78 = por %p76, %p77
      %p79 = scmp.ne.s32.totalorder %s68, %s69
      %p80 = scmp.eq.s32.totalorder %s22, 0
      %p81 = por %p79, %p80
      %p82 = scmp.ne.s32.totalorder %s68, %s69
      %p83 = scmp.eq.s32.totalorder %s23, 1
      %p84 = por %p82, %p83
      %p86 = scmp.ne.s32.totalorder %s69, %s85
      %p87 = scmp.eq.s32.totalorder %s23, 0
      %p88 = por %p86, %p87
      %s89 = ssub.s32 %s25, %s32
      %p90 = scmp.eq.s32.totalorder %s89, 0
      %s92 = sadd.s32 %s91, 1
      %s93 = scalar_select %p90, %s91, %s92
      %p96 = pneg %p90
      %p97 = scmp.eq.s32.totalorder %s17, 1
      %p98 = por %p96, %p97
      %p99 = scmp.ne.s32.totalorder %s91, %s94
      %p100 = scmp.eq.s32.totalorder %s17, 0
      %p101 = por %p99, %p100
      %p102 = scmp.ne.s32.totalorder %s91, %s94
      %p103 = scmp.eq.s32.totalorder %s22, 1
      %p104 = por %p102, %p103
      %p105 = scmp.ne.s32.totalorder %s94, %s95
      %p106 = scmp.eq.s32.totalorder %s22, 0
      %p107 = por %p105, %p106
      %p108 = scmp.ne.s32.totalorder %s94, %s95
      %p109 = scmp.eq.s32.totalorder %s23, 1
      %p110 = por %p108, %p109
      %p112 = scmp.ne.s32.totalorder %s95, %s111
      %p113 = scmp.eq.s32.totalorder %s23, 0
      %p114 = por %p112, %p113
      %s116 = sadd.s32 %s115, 1
      %p119 = scmp.eq.s32.totalorder %s17, 1
      %p120 = scmp.ne.s32.totalorder %s115, %s117
      %p121 = scmp.eq.s32.totalorder %s17, 0
      %p122 = por %p120, %p121
      %p123 = scmp.ne.s32.totalorder %s115, %s117
      %p124 = scmp.eq.s32.totalorder %s22, 1
      %p125 = por %p123, %p124
      %p126 = scmp.ne.s32.totalorder %s117, %s118
      %p127 = scmp.eq.s32.totalorder %s22, 0
      %p128 = por %p126, %p127
      %p129 = scmp.ne.s32.totalorder %s117, %s118
      %p130 = scmp.eq.s32.totalorder %s23, 1
      %p131 = por %p129, %p130
      %p133 = scmp.ne.s32.totalorder %s118, %s132
      %p134 = scmp.eq.s32.totalorder %s23, 0
      %p135 = por %p133, %p134
      %s136 = ssub.s32 %s24, %s36
      %s137 = ssub.s32 %s25, %s32
      %s138 = sor.u32 %s136, %s137
      %p139 = scmp.eq.s32.totalorder %s138, 0
      %s141 = sadd.s32 %s140, 1
      %s142 = scalar_select %p139, %s140, %s141
      %p145 = pneg %p139
      %p146 = scmp.eq.s32.totalorder %s17, 1
      %p147 = por %p145, %p146
      %p148 = scmp.ne.s32.totalorder %s140, %s143
      %p149 = scmp.eq.s32.totalorder %s17, 0
      %p150 = por %p148, %p149
      %p151 = scmp.ne.s32.totalorder %s140, %s143
      %p152 = scmp.eq.s32.totalorder %s22, 1
      %p153 = por %p151, %p152
      %p154 = scmp.ne.s32.totalorder %s143, %s144
      %p155 = scmp.eq.s32.totalorder %s22, 0
      %p156 = por %p154, %p155
      %p157 = scmp.ne.s32.totalorder %s143, %s144
      %p158 = scmp.eq.s32.totalorder %s23, 1
      %p159 = por %p157, %p158
      %p161 = scmp.ne.s32.totalorder %s144, %s160
      %p162 = scmp.eq.s32.totalorder %s23, 0
      %p163 = por %p161, %p162
      %p164 = scmp.le.s32.totalorder 1, %s17
      %p165 = scmp.lt.s32.totalorder %s17, 3
      %p166 = pnand %p164, %p165
      %p167 = pneg %p166
      // Predicated region
      $region9: #{tpu_custom_call.1} parent=5 // pred_check
        _
      $region10: #{tpu_custom_call.1} parent=5 // pred_check_branch
        %169 = sbr.rel (%p166) target = $region12
      $region11: #{tpu_custom_call.1} parent=5 // pred_region
        %s170 = ssub.s32 %s17, 1
        // Predicated region
        $region13: #{tpu_custom_call.1} parent=11 // pred_check
          %p171 = pneg %p81
        $region14: #{tpu_custom_call.1} parent=11 // pred_check_branch
          %173 = sbr.rel (%p171) target = $region16
        $region15: #{tpu_custom_call.1} parent=11 // pred_region
          %p174 = scmp.lt.s32.totalorder %s27, 0
          %s175 = scalar_select %p174, %s27, 0
          %s176 = smul.addr %s175, 8
          %s177 = scalar_lea.vmem %s1, %s176
        $region16: #{tpu_custom_call.1} parent=11 // pred_fallthru
          _
        // Predicated region
        $region17: #{tpu_custom_call.1} parent=11 // pred_check
          %p178 = pneg %p107
        $region18: #{tpu_custom_call.1} parent=11 // pred_check_branch
          %180 = sbr.rel (%p178) target = $region20
        $region19: #{tpu_custom_call.1} parent=11 // pred_region
          %p181 = scmp.lt.s32.totalorder %s27, 0
          %s182 = scalar_select %p181, %s27, 0
          %s183 = smul.addr %s182, 8
          %s184 = scalar_lea.vmem %s2, %s183
        $region20: #{tpu_custom_call.1} parent=11 // pred_fallthru
          _
        // Predicated region
        $region21: #{tpu_custom_call.1} parent=11 // pred_check
          %p185 = pneg %p128
        $region22: #{tpu_custom_call.1} parent=11 // pred_check_branch
          %187 = sbr.rel (%p185) target = $region24
        $region23: #{tpu_custom_call.1} parent=11 // pred_region
          %189 = vsyncadd [#allocation7], 0
          %s191 = sshll.u32 %s3, 4
          %s192 = int_to_ptr.hbm [resolvable:$true] %s191
          %s193 = sshll.u32 [#allocation6], 4
          %s194 = int_to_ptr.vmem [resolvable:$true] %s193
          %196 = dma.hbm_to_vmem [thread:$0]  %s192, 112, %s194, [#allocation7]
        $region24: #{tpu_custom_call.1} parent=11 // pred_fallthru
          _
      $region12: #{tpu_custom_call.1} parent=5 // pred_fallthru
        _
      %p197 = scmp.lt.s32.totalorder %s17, 2
      // Predicated region
      $region25: #{tpu_custom_call.1} parent=5 // pred_check
        %p198 = pneg %p197
      $region26: #{tpu_custom_call.1} parent=5 // pred_check_branch
        %200 = sbr.rel (%p198) target = $region28
      $region27: #{tpu_custom_call.1} parent=5 // pred_region
        // Predicated region
        $region29: #{tpu_custom_call.1} parent=27 // pred_check
          %p201 = pneg %p49
        $region30: #{tpu_custom_call.1} parent=27 // pred_check_branch
          %203 = sbr.rel (%p201) target = $region32
        $region31: #{tpu_custom_call.1} parent=27 // pred_region
          %s204 = sand.u32 %s39, 1
          %s205 = scalar_lea.sflag [#allocation4], %s204
          %s206 = sand.u32 %s39, 1
          %s207 = smul.addr %s206, 40
          %s208 = scalar_lea.vmem [#allocation3], %s207
          %210 = vsyncadd %s205, 0
          %s211 = smul.addr %s24, 10
          %s212 = smul.addr %s211, 4
          %s213 = scalar_lea.hbm %s0, %s212
          %s215 = sshll.u32 %s213, 4
          %s216 = int_to_ptr.hbm [resolvable:$true] %s215
          %s217 = sshll.u32 %s208, 4
          %s218 = int_to_ptr.vmem [resolvable:$true] %s217
          %220 = dma.hbm_to_vmem [thread:$0]  %s216, 640, %s218, %s205
        $region32: #{tpu_custom_call.1} parent=27 // pred_fallthru
          _
      $region28: #{tpu_custom_call.1} parent=5 // pred_fallthru
        _
      %p221 = scmp.le.s32.totalorder 1, %s17
      %p222 = scmp.lt.s32.totalorder %s17, 3
      %p223 = pnand %p221, %p222
      %p224 = pneg %p223
      // Predicated region
      $region33: #{tpu_custom_call.1} parent=5 // pred_check
        _
      $region34: #{tpu_custom_call.1} parent=5 // pred_check_branch
        %226 = sbr.rel (%p223) target = $region36
      $region35: #{tpu_custom_call.1} parent=5 // pred_region
        %s227 = ssub.s32 %s17, 1
        %s228 = sand.u32 %s42, 1
        %s229 = scalar_lea.sflag [#allocation4], %s228
        %s230 = sand.u32 %s42, 1
        %s231 = smul.addr %s230, 40
        %s232 = scalar_lea.vmem [#allocation3], %s231
        // Predicated region
        $region37: #{tpu_custom_call.1} parent=35 // pred_check
          %p233 = pneg %p55
        $region38: #{tpu_custom_call.1} parent=35 // pred_check_branch
          %235 = sbr.rel (%p233) target = $region40
        $region39: #{tpu_custom_call.1} parent=35 // pred_region
          %237 = dma.done %s229, 640
        $region40: #{tpu_custom_call.1} parent=35 // pred_fallthru
          _
        // Predicated region
        $region41: #{tpu_custom_call.1} parent=35 // pred_check
          %p238 = pneg %p128
        $region42: #{tpu_custom_call.1} parent=35 // pred_check_branch
          %240 = sbr.rel (%p238) target = $region44
        $region43: #{tpu_custom_call.1} parent=35 // pred_region
          %242 = dma.done [#allocation7], 112
        $region44: #{tpu_custom_call.1} parent=35 // pred_fallthru
          _
        %s243 = sand.u32 %s42, 1
        %s244 = scalar_lea.sflag [#allocation4], %s243
        %s245 = sand.u32 %s42, 1
        %s246 = smul.addr %s245, 40
        %s247 = scalar_lea.vmem [#allocation3], %s246
        %p248 = pneg %p55
        %p249 = pneg %p52
        %p250 = scmp.lt.s32.totalorder %s27, 0
        %s251 = scalar_select %p250, %s27, 0
        %s252 = smul.addr %s251, 8
        %s253 = scalar_lea.vmem %s1, %s252
        %p254 = pneg %p81
        %p255 = pneg %p78
        %p256 = scmp.lt.s32.totalorder %s27, 0
        %s257 = scalar_select %p256, %s27, 0
        %s258 = smul.addr %s257, 8
        %s259 = scalar_lea.vmem %s2, %s258
        %p260 = pneg %p107
        %p261 = pneg %p104
        %p262 = pneg %p128
        %p263 = pneg %p125
        %p264 = pneg %p156
        %p265 = pneg %p153
        %s266 = sand.u32 %s143, 1
        %s267 = scalar_lea.sflag [#allocation5], %s266
        %s268 = sand.u32 %s143, 1
        %s269 = smul.addr %s268, 56
        %s270 = scalar_lea.vmem [#allocation8], %s269
        %p271 = scmp.lt.s32.totalorder %s27, 0
        %s272 = scalar_select %p271, %s27, 0
        %s273 = smul.addr %s272, 8
        %s274 = scalar_lea.vmem %s1, %s273
        %p275 = scmp.lt.s32.totalorder %s27, 0
        %s276 = scalar_select %p275, %s27, 0
        %s277 = smul.addr %s276, 8
        %s278 = scalar_lea.vmem %s2, %s277
        %p279 = scmp.eq.s32.totalorder %s27, 0
        // Predicated region
        $region45: #{tpu_custom_call.1} parent=35 // pred_check
          %p280 = pneg %p279
        $region46: #{tpu_custom_call.1} parent=35 // pred_check_branch
          %282 = sbr.rel (%p280) target = $region48
        $region47: #{tpu_custom_call.1} parent=35 // pred_region
          %v283 = vld [vmem:[%s232] sm:$0xff]
          %v284 = vld [vmem:[%s232 + $0x8] sm:$0xff]
          %v285 = vld [vmem:[%s232 + $0x10] sm:$0xff]
          %v286 = vld [vmem:[%s232 + $0x18] sm:$0xf]
          %291 = vst [vmem:[#allocation1] ss:$2 sm:$0xff] %v283
          %s292 = scalar_lea.vmem [#allocation1], 16
          %293 = vst [vmem:[%s292] ss:$2 sm:$0xff] %v284
          %s294 = scalar_lea.vmem [#allocation1], 32
          %295 = vst [vmem:[%s294] ss:$2 sm:$0xff] %v285
          %s296 = scalar_lea.vmem [#allocation1], 48
          %297 = vst [vmem:[%s296] ss:$2 sm:$0xff] %v286
          %v298 = vld.sshfl [vmem:[#allocation1] sm:$0xff pattern:$0x75316420]
          %v299 = vld.sshfl [vmem:[#allocation1 + $0x8] sm:$0xff pattern:$0x75316420]
          %v300 = vld.sshfl [vmem:[#allocation1 + $0x10] sm:$0xff pattern:$0x75316420]
          %v301 = vld.sshfl [vmem:[#allocation1 + $0x18] sm:$0xff pattern:$0x75316420]
          %v302 = vld.sshfl [vmem:[#allocation1 + $0x20] sm:$0xff pattern:$0x75316420]
          %v303 = vld.sshfl [vmem:[#allocation1 + $0x28] sm:$0xff pattern:$0x75316420]
          %v304 = vld.sshfl [vmem:[#allocation1 + $0x30] sm:$0xff pattern:$0x75316420]
          %312 = vst [vmem:[#allocation2] sm:$0xf] %v298
          %313 = vst [vmem:[#allocation2 + $0x8] sm:$0xf] %v299
          %314 = vst [vmem:[#allocation2 + $0x10] sm:$0xf] %v300
          %315 = vst [vmem:[#allocation2 + $0x18] sm:$0xf] %v301
          %316 = vst [vmem:[#allocation2 + $0x20] sm:$0xf] %v302
          %317 = vst [vmem:[#allocation2 + $0x28] sm:$0xf] %v303
          %318 = vst [vmem:[#allocation2 + $0x30] sm:$0xf] %v304
          %v319 = vld [vmem:[%s232] sm:$0xff]
          %v320 = vld [vmem:[%s232 + $0x8] sm:$0xff]
          %v321 = vld [vmem:[%s232 + $0x10] sm:$0xff]
          %v322 = vld [vmem:[%s232 + $0x18] sm:$0xff]
          %s327 = scalar_lea.vmem [#allocation1], 1
          %328 = vst [vmem:[%s327] ss:$2 sm:$0xff] %v319
          %s329 = scalar_lea.vmem [#allocation1], 17
          %330 = vst [vmem:[%s329] ss:$2 sm:$0xff] %v320
          %s331 = scalar_lea.vmem [#allocation1], 33
          %332 = vst [vmem:[%s331] ss:$2 sm:$0xff] %v321
          %s333 = scalar_lea.vmem [#allocation1], 49
          %334 = vst [vmem:[%s333] ss:$2 sm:$0xff] %v322
          %v335 = vld.sshfl [vmem:[#allocation1] sm:$0xff pattern:$0x75316420]
          %v336 = vld.sshfl [vmem:[#allocation1 + $0x8] sm:$0xff pattern:$0x75316420]
          %v337 = vld.sshfl [vmem:[#allocation1 + $0x10] sm:$0xff pattern:$0x75316420]
          %v338 = vld.sshfl [vmem:[#allocation1 + $0x18] sm:$0xff pattern:$0x75316420]
          %v339 = vld.sshfl [vmem:[#allocation1 + $0x20] sm:$0xff pattern:$0x75316420]
          %v340 = vld.sshfl [vmem:[#allocation1 + $0x28] sm:$0xff pattern:$0x75316420]
          %v341 = vld.sshfl [vmem:[#allocation1 + $0x30] sm:$0xff pattern:$0x75316420]
          %v342 = vld.sshfl [vmem:[#allocation1 + $0x38] sm:$0xff pattern:$0x75316420]
          %343 = vrot.lane.b32.xlu0 %v335, 127
          %v344 = vpop.permute.xlu0 %343
          %345 = vrot.lane.b32.xlu0 %v336, 127
          %v346 = vpop.permute.xlu0 %345
          %347 = vrot.lane.b32.xlu0 %v337, 127
          %v348 = vpop.permute.xlu0 %347
          %349 = vrot.lane.b32.xlu0 %v338, 127
          %v350 = vpop.permute.xlu0 %349
          %351 = vrot.lane.b32.xlu0 %v339, 127
          %v352 = vpop.permute.xlu0 %351
          %353 = vrot.lane.b32.xlu0 %v340, 127
          %v354 = vpop.permute.xlu0 %353
          %355 = vrot.lane.b32.xlu0 %v341, 127
          %v356 = vpop.permute.xlu0 %355
          %357 = vrot.lane.b32.xlu0 %v342, 127
          %v358 = vpop.permute.xlu0 %357
          %vm359 = vcmask 1039360
          %v360 = vsel %vm359, %v344, %v346
          %v361 = vsel %vm359, %v346, %v348
          %v362 = vsel %vm359, %v348, %v350
          %v363 = vsel %vm359, %v350, %v352
          %v364 = vsel %vm359, %v352, %v354
          %v365 = vsel %vm359, %v354, %v356
          %v366 = vsel %vm359, %v356, %v358
          %374 = vst [vmem:[#allocation2] sm:$0xf0] %v360
          %375 = vst [vmem:[#allocation2 + $0x8] sm:$0xf0] %v361
          %376 = vst [vmem:[#allocation2 + $0x10] sm:$0xf0] %v362
          %377 = vst [vmem:[#allocation2 + $0x18] sm:$0xf0] %v363
          %378 = vst [vmem:[#allocation2 + $0x20] sm:$0xf0] %v364
          %379 = vst [vmem:[#allocation2 + $0x28] sm:$0xf0] %v365
          %380 = vst [vmem:[#allocation2 + $0x30] sm:$0xf0] %v366
          %v381 = vld [vmem:[%s232] sm:$0xff]
          %v382 = vld [vmem:[%s232 + $0x8] sm:$0xff]
          %v383 = vld [vmem:[%s232 + $0x10] sm:$0xff]
          %v384 = vld [vmem:[%s232 + $0x18] sm:$0xff]
          %389 = vst [vmem:[#allocation1] ss:$2 sm:$0xff] %v381
          %s390 = scalar_lea.vmem [#allocation1], 16
          %391 = vst [vmem:[%s390] ss:$2 sm:$0xff] %v382
          %s392 = scalar_lea.vmem [#allocation1], 32
          %393 = vst [vmem:[%s392] ss:$2 sm:$0xff] %v383
          %s394 = scalar_lea.vmem [#allocation1], 48
          %395 = vst [vmem:[%s394] ss:$2 sm:$0xff] %v384
          %v396 = vld.sshfl [vmem:[#allocation1] sm:$0xff pattern:$0x75316420]
          %v397 = vld.sshfl [vmem:[#allocation1 + $0x8] sm:$0xff pattern:$0x75316420]
          %v398 = vld.sshfl [vmem:[#allocation1 + $0x10] sm:$0xff pattern:$0x75316420]
          %v399 = vld.sshfl [vmem:[#allocation1 + $0x18] sm:$0xff pattern:$0x75316420]
          %v400 = vld.sshfl [vmem:[#allocation1 + $0x20] sm:$0xff pattern:$0x75316420]
          %v401 = vld.sshfl [vmem:[#allocation1 + $0x28] sm:$0xff pattern:$0x75316420]
          %v402 = vld.sshfl [vmem:[#allocation1 + $0x30] sm:$0xff pattern:$0x75316420]
          %v403 = vld.sshfl [vmem:[#allocation1 + $0x38] sm:$0xff pattern:$0x75316420]
          %404 = vrot.lane.b32.xlu0 %v396, 126
          %v405 = vpop.permute.xlu0 %404
          %406 = vrot.lane.b32.xlu0 %v397, 126
          %v407 = vpop.permute.xlu0 %406
          %408 = vrot.lane.b32.xlu0 %v398, 126
          %v409 = vpop.permute.xlu0 %408
          %410 = vrot.lane.b32.xlu0 %v399, 126
          %v411 = vpop.permute.xlu0 %410
          %412 = vrot.lane.b32.xlu0 %v400, 126
          %v413 = vpop.permute.xlu0 %412
          %414 = vrot.lane.b32.xlu0 %v401, 126
          %v415 = vpop.permute.xlu0 %414
          %416 = vrot.lane.b32.xlu0 %v402, 126
          %v417 = vpop.permute.xlu0 %416
          %418 = vrot.lane.b32.xlu0 %v403, 126
          %v419 = vpop.permute.xlu0 %418
          %vm420 = vcmask 1031168
          %v421 = vsel %vm420, %v405, %v407
          %v422 = vsel %vm420, %v407, %v409
          %v423 = vsel %vm420, %v409, %v411
          %v424 = vsel %vm420, %v411, %v413
          %v425 = vsel %vm420, %v413, %v415
          %v426 = vsel %vm420, %v415, %v417
          %v427 = vsel %vm420, %v417, %v419
          %435 = vst [vmem:[#allocation2 + $0x38] sm:$0xf] %v421
          %436 = vst [vmem:[#allocation2 + $0x40] sm:$0xf] %v422
          %437 = vst [vmem:[#allocation2 + $0x48] sm:$0xf] %v423
          %438 = vst [vmem:[#allocation2 + $0x50] sm:$0xf] %v424
          %439 = vst [vmem:[#allocation2 + $0x58] sm:$0xf] %v425
          %440 = vst [vmem:[#allocation2 + $0x60] sm:$0xf] %v426
          %441 = vst [vmem:[#allocation2 + $0x68] sm:$0xf] %v427
          %v442 = vld [vmem:[%s232] sm:$0xff]
          %v443 = vld [vmem:[%s232 + $0x8] sm:$0xff]
          %v444 = vld [vmem:[%s232 + $0x10] sm:$0xff]
          %v445 = vld [vmem:[%s232 + $0x18] sm:$0xff]
          %s450 = scalar_lea.vmem [#allocation1], 1
          %451 = vst [vmem:[%s450] ss:$2 sm:$0xff] %v442
          %s452 = scalar_lea.vmem [#allocation1], 17
          %453 = vst [vmem:[%s452] ss:$2 sm:$0xff] %v443
          %s454 = scalar_lea.vmem [#allocation1], 33
          %455 = vst [vmem:[%s454] ss:$2 sm:$0xff] %v444
          %s456 = scalar_lea.vmem [#allocation1], 49
          %457 = vst [vmem:[%s456] ss:$2 sm:$0xff] %v445
          %v458 = vld.sshfl [vmem:[#allocation1] sm:$0xff pattern:$0x75316420]
          %v459 = vld.sshfl [vmem:[#allocation1 + $0x8] sm:$0xff pattern:$0x75316420]
          %v460 = vld.sshfl [vmem:[#allocation1 + $0x10] sm:$0xff pattern:$0x75316420]
          %v461 = vld.sshfl [vmem:[#allocation1 + $0x18] sm:$0xff pattern:$0x75316420]
          %v462 = vld.sshfl [vmem:[#allocation1 + $0x20] sm:$0xff pattern:$0x75316420]
          %v463 = vld.sshfl [vmem:[#allocation1 + $0x28] sm:$0xff pattern:$0x75316420]
          %v464 = vld.sshfl [vmem:[#allocation1 + $0x30] sm:$0xff pattern:$0x75316420]
          %v465 = vld.sshfl [vmem:[#allocation1 + $0x38] sm:$0xff pattern:$0x75316420]
          %466 = vrot.lane.b32.xlu0 %v458, 118
          %v467 = vpop.permute.xlu0 %466
          %468 = vrot.lane.b32.xlu0 %v459, 118
          %v469 = vpop.permute.xlu0 %468
          %470 = vrot.lane.b32.xlu0 %v460, 118
          %v471 = vpop.permute.xlu0 %470
          %472 = vrot.lane.b32.xlu0 %v461, 118
          %v473 = vpop.permute.xlu0 %472
          %474 = vrot.lane.b32.xlu0 %v462, 118
          %v475 = vpop.permute.xlu0 %474
          %476 = vrot.lane.b32.xlu0 %v463, 118
          %v477 = vpop.permute.xlu0 %476
          %478 = vrot.lane.b32.xlu0 %v464, 118
          %v479 = vpop.permute.xlu0 %478
          %480 = vrot.lane.b32.xlu0 %v465, 118
          %v481 = vpop.permute.xlu0 %480
          %vm482 = vcmask 965632
          %v483 = vsel %vm482, %v467, %v469
          %v484 = vsel %vm482, %v469, %v471
          %v485 = vsel %vm482, %v471, %v473
          %v486 = vsel %vm482, %v473, %v475
          %v487 = vsel %vm482, %v475, %v477
          %v488 = vsel %vm482, %v477, %v479
          %v489 = vsel %vm482, %v479, %v481
          %497 = vst [vmem:[#allocation2 + $0x38] sm:$0xf0] %v483
          %498 = vst [vmem:[#allocation2 + $0x40] sm:$0xf0] %v484
          %499 = vst [vmem:[#allocation2 + $0x48] sm:$0xf0] %v485
          %500 = vst [vmem:[#allocation2 + $0x50] sm:$0xf0] %v486
          %501 = vst [vmem:[#allocation2 + $0x58] sm:$0xf0] %v487
          %502 = vst [vmem:[#allocation2 + $0x60] sm:$0xf0] %v488
          %503 = vst [vmem:[#allocation2 + $0x68] sm:$0xf0] %v489
          %v504 = vld [vmem:[%s232] sm:$0xff]
          %v505 = vld [vmem:[%s232 + $0x8] sm:$0xff]
          %v506 = vld [vmem:[%s232 + $0x10] sm:$0xff]
          %v507 = vld [vmem:[%s232 + $0x18] sm:$0xff]
          %512 = vst [vmem:[#allocation1] ss:$2 sm:$0xff] %v504
          %s513 = scalar_lea.vmem [#allocation1], 16
          %514 = vst [vmem:[%s513] ss:$2 sm:$0xff] %v505
          %s515 = scalar_lea.vmem [#allocation1], 32
          %516 = vst [vmem:[%s515] ss:$2 sm:$0xff] %v506
          %s517 = scalar_lea.vmem [#allocation1], 48
          %518 = vst [vmem:[%s517] ss:$2 sm:$0xff] %v507
          %v519 = vld.sshfl [vmem:[#allocation1] sm:$0xff pattern:$0x75316420]
          %v520 = vld.sshfl [vmem:[#allocation1 + $0x8] sm:$0xff pattern:$0x75316420]
          %v521 = vld.sshfl [vmem:[#allocation1 + $0x10] sm:$0xff pattern:$0x75316420]
          %v522 = vld.sshfl [vmem:[#allocation1 + $0x18] sm:$0xff pattern:$0x75316420]
          %v523 = vld.sshfl [vmem:[#allocation1 + $0x20] sm:$0xff pattern:$0x75316420]
          %v524 = vld.sshfl [vmem:[#allocation1 + $0x28] sm:$0xff pattern:$0x75316420]
          %v525 = vld.sshfl [vmem:[#allocation1 + $0x30] sm:$0xff pattern:$0x75316420]
          %v526 = vld.sshfl [vmem:[#allocation1 + $0x38] sm:$0xff pattern:$0x75316420]
          %527 = vrot.lane.b32.xlu0 %v519, 117
          %v528 = vpop.permute.xlu0 %527
          %529 = vrot.lane.b32.xlu0 %v520, 117
          %v530 = vpop.permute.xlu0 %529
          %531 = vrot.lane.b32.xlu0 %v521, 117
          %v532 = vpop.permute.xlu0 %531
          %533 = vrot.lane.b32.xlu0 %v522, 117
          %v534 = vpop.permute.xlu0 %533
          %535 = vrot.lane.b32.xlu0 %v523, 117
          %v536 = vpop.permute.xlu0 %535
          %537 = vrot.lane.b32.xlu0 %v524, 117
          %v538 = vpop.permute.xlu0 %537
          %539 = vrot.lane.b32.xlu0 %v525, 117
          %v540 = vpop.permute.xlu0 %539
          %541 = vrot.lane.b32.xlu0 %v526, 117
          %v542 = vpop.permute.xlu0 %541
          %vm543 = vcmask 957440
          %v544 = vsel %vm543, %v528, %v530
          %v545 = vsel %vm543, %v530, %v532
          %v546 = vsel %vm543, %v532, %v534
          %v547 = vsel %vm543, %v534, %v536
          %v548 = vsel %vm543, %v536, %v538
          %v549 = vsel %vm543, %v538, %v540
          %v550 = vsel %vm543, %v540, %v542
          %558 = vst [vmem:[#allocation2 + $0x70] sm:$0xf] %v544
          %559 = vst [vmem:[#allocation2 + $0x78] sm:$0xf] %v545
          %560 = vst [vmem:[#allocation2 + $0x80] sm:$0xf] %v546
          %561 = vst [vmem:[#allocation2 + $0x88] sm:$0xf] %v547
          %562 = vst [vmem:[#allocation2 + $0x90] sm:$0xf] %v548
          %563 = vst [vmem:[#allocation2 + $0x98] sm:$0xf] %v549
          %564 = vst [vmem:[#allocation2 + $0xa0] sm:$0xf] %v550
          %v565 = vld [vmem:[%s232] sm:$0xff]
          %v566 = vld [vmem:[%s232 + $0x8] sm:$0xff]
          %v567 = vld [vmem:[%s232 + $0x10] sm:$0xff]
          %v568 = vld [vmem:[%s232 + $0x18] sm:$0xff]
          %s573 = scalar_lea.vmem [#allocation1], 1
          %574 = vst [vmem:[%s573] ss:$2 sm:$0xff] %v565
          %s575 = scalar_lea.vmem [#allocation1], 17
          %576 = vst [vmem:[%s575] ss:$2 sm:$0xff] %v566
          %s577 = scalar_lea.vmem [#allocation1], 33
          %578 = vst [vmem:[%s577] ss:$2 sm:$0xff] %v567
          %s579 = scalar_lea.vmem [#allocation1], 49
          %580 = vst [vmem:[%s579] ss:$2 sm:$0xff] %v568
          %v581 = vld.sshfl [vmem:[#allocation1] sm:$0xff pattern:$0x75316420]
          %v582 = vld.sshfl [vmem:[#allocation1 + $0x8] sm:$0xff pattern:$0x75316420]
          %v583 = vld.sshfl [vmem:[#allocation1 + $0x10] sm:$0xff pattern:$0x75316420]
          %v584 = vld.sshfl [vmem:[#allocation1 + $0x18] sm:$0xff pattern:$0x75316420]
          %v585 = vld.sshfl [vmem:[#allocation1 + $0x20] sm:$0xff pattern:$0x75316420]
          %v586 = vld.sshfl [vmem:[#allocation1 + $0x28] sm:$0xff pattern:$0x75316420]
          %v587 = vld.sshfl [vmem:[#allocation1 + $0x30] sm:$0xff pattern:$0x75316420]
          %v588 = vld.sshfl [vmem:[#allocation1 + $0x38] sm:$0xff pattern:$0x75316420]
          %589 = vrot.lane.b32.xlu0 %v581, 116
          %v590 = vpop.permute.xlu0 %589
          %591 = vrot.lane.b32.xlu0 %v582, 116
          %v592 = vpop.permute.xlu0 %591
          %593 = vrot.lane.b32.xlu0 %v583, 116
          %v594 = vpop.permute.xlu0 %593
          %595 = vrot.lane.b32.xlu0 %v584, 116
          %v596 = vpop.permute.xlu0 %595
          %597 = vrot.lane.b32.xlu0 %v585, 116
          %v598 = vpop.permute.xlu0 %597
          %599 = vrot.lane.b32.xlu0 %v586, 116
          %v600 = vpop.permute.xlu0 %599
          %601 = vrot.lane.b32.xlu0 %v587, 116
          %v602 = vpop.permute.xlu0 %601
          %603 = vrot.lane.b32.xlu0 %v588, 116
          %v604 = vpop.permute.xlu0 %603
          %vm605 = vcmask 949248
          %v606 = vsel %vm605, %v590, %v592
          %v607 = vsel %vm605, %v592, %v594
          %v608 = vsel %vm605, %v594, %v596
          %v609 = vsel %vm605, %v596, %v598
          %v610 = vsel %vm605, %v598, %v600
          %v611 = vsel %vm605, %v600, %v602
          %v612 = vsel %vm605, %v602, %v604
          %620 = vst [vmem:[#allocation2 + $0x70] sm:$0xf0] %v606
          %621 = vst [vmem:[#allocation2 + $0x78] sm:$0xf0] %v607
          %622 = vst [vmem:[#allocation2 + $0x80] sm:$0xf0] %v608
          %623 = vst [vmem:[#allocation2 + $0x88] sm:$0xf0] %v609
          %624 = vst [vmem:[#allocation2 + $0x90] sm:$0xf0] %v610
          %625 = vst [vmem:[#allocation2 + $0x98] sm:$0xf0] %v611
          %626 = vst [vmem:[#allocation2 + $0xa0] sm:$0xf0] %v612
          %v627 = vld [vmem:[%s232] sm:$0xff]
          %v628 = vld [vmem:[%s232 + $0x8] sm:$0xff]
          %v629 = vld [vmem:[%s232 + $0x10] sm:$0xff]
          %v630 = vld [vmem:[%s232 + $0x18] sm:$0xff]
          %635 = vst [vmem:[#allocation1] ss:$2 sm:$0xff] %v627
          %s636 = scalar_lea.vmem [#allocation1], 16
          %637 = vst [vmem:[%s636] ss:$2 sm:$0xff] %v628
          %s638 = scalar_lea.vmem [#allocation1], 32
          %639 = vst [vmem:[%s638] ss:$2 sm:$0xff] %v629
          %s640 = scalar_lea.vmem [#allocation1], 48
          %641 = vst [vmem:[%s640] ss:$2 sm:$0xff] %v630
          %v642 = vld.sshfl [vmem:[#allocation1] sm:$0xff pattern:$0x75316420]
          %v643 = vld.sshfl [vmem:[#allocation1 + $0x8] sm:$0xff pattern:$0x75316420]
          %v644 = vld.sshfl [vmem:[#allocation1 + $0x10] sm:$0xff pattern:$0x75316420]
          %v645 = vld.sshfl [vmem:[#allocation1 + $0x18] sm:$0xff pattern:$0x75316420]
          %v646 = vld.sshfl [vmem:[#allocation1 + $0x20] sm:$0xff pattern:$0x75316420]
          %v647 = vld.sshfl [vmem:[#allocation1 + $0x28] sm:$0xff pattern:$0x75316420]
          %v648 = vld.sshfl [vmem:[#allocation1 + $0x30] sm:$0xff pattern:$0x75316420]
          %v649 = vld.sshfl [vmem:[#allocation1 + $0x38] sm:$0xff pattern:$0x75316420]
          %650 = vrot.lane.b32.xlu0 %v642, 108
          %v651 = vpop.permute.xlu0 %650
          %652 = vrot.lane.b32.xlu0 %v643, 108
          %v653 = vpop.permute.xlu0 %652
          %654 = vrot.lane.b32.xlu0 %v644, 108
          %v655 = vpop.permute.xlu0 %654
          %656 = vrot.lane.b32.xlu0 %v645, 108
          %v657 = vpop.permute.xlu0 %656
          %658 = vrot.lane.b32.xlu0 %v646, 108
          %v659 = vpop.permute.xlu0 %658
          %660 = vrot.lane.b32.xlu0 %v647, 108
          %v661 = vpop.permute.xlu0 %660
          %662 = vrot.lane.b32.xlu0 %v648, 108
          %v663 = vpop.permute.xlu0 %662
          %664 = vrot.lane.b32.xlu0 %v649, 108
          %v665 = vpop.permute.xlu0 %664
          %vm666 = vcmask 883712
          %v667 = vsel %vm666, %v651, %v653
          %v668 = vsel %vm666, %v653, %v655
          %v669 = vsel %vm666, %v655, %v657
          %v670 = vsel %vm666, %v657, %v659
          %v671 = vsel %vm666, %v659, %v661
          %v672 = vsel %vm666, %v661, %v663
          %v673 = vsel %vm666, %v663, %v665
          %681 = vst [vmem:[#allocation2 + $0xa8] sm:$0xf] %v667
          %682 = vst [vmem:[#allocation2 + $0xb0] sm:$0xf] %v668
          %683 = vst [vmem:[#allocation2 + $0xb8] sm:$0xf] %v669
          %684 = vst [vmem:[#allocation2 + $0xc0] sm:$0xf] %v670
          %685 = vst [vmem:[#allocation2 + $0xc8] sm:$0xf] %v671
          %686 = vst [vmem:[#allocation2 + $0xd0] sm:$0xf] %v672
          %687 = vst [vmem:[#allocation2 + $0xd8] sm:$0xf] %v673
          %v688 = vld [vmem:[%s232] sm:$0xff]
          %v689 = vld [vmem:[%s232 + $0x8] sm:$0xff]
          %v690 = vld [vmem:[%s232 + $0x10] sm:$0xff]
          %v691 = vld [vmem:[%s232 + $0x18] sm:$0xff]
          %s696 = scalar_lea.vmem [#allocation1], 1
          %697 = vst [vmem:[%s696] ss:$2 sm:$0xff] %v688
          %s698 = scalar_lea.vmem [#allocation1], 17
          %699 = vst [vmem:[%s698] ss:$2 sm:$0xff] %v689
          %s700 = scalar_lea.vmem [#allocation1], 33
          %701 = vst [vmem:[%s700] ss:$2 sm:$0xff] %v690
          %s702 = scalar_lea.vmem [#allocation1], 49
          %703 = vst [vmem:[%s702] ss:$2 sm:$0xff] %v691
          %v704 = vld.sshfl [vmem:[#allocation1] sm:$0xff pattern:$0x75316420]
          %v705 = vld.sshfl [vmem:[#allocation1 + $0x8] sm:$0xff pattern:$0x75316420]
          %v706 = vld.sshfl [vmem:[#allocation1 + $0x10] sm:$0xff pattern:$0x75316420]
          %v707 = vld.sshfl [vmem:[#allocation1 + $0x18] sm:$0xff pattern:$0x75316420]
          %v708 = vld.sshfl [vmem:[#allocation1 + $0x20] sm:$0xff pattern:$0x75316420]
          %v709 = vld.sshfl [vmem:[#allocation1 + $0x28] sm:$0xff pattern:$0x75316420]
          %v710 = vld.sshfl [vmem:[#allocation1 + $0x30] sm:$0xff pattern:$0x75316420]
          %v711 = vld.sshfl [vmem:[#allocation1 + $0x38] sm:$0xff pattern:$0x75316420]
          %712 = vrot.lane.b32.xlu0 %v704, 107
          %v713 = vpop.permute.xlu0 %712
          %714 = vrot.lane.b32.xlu0 %v705, 107
          %v715 = vpop.permute.xlu0 %714
          %716 = vrot.lane.b32.xlu0 %v706, 107
          %v717 = vpop.permute.xlu0 %716
          %718 = vrot.lane.b32.xlu0 %v707, 107
          %v719 = vpop.permute.xlu0 %718
          %720 = vrot.lane.b32.xlu0 %v708, 107
          %v721 = vpop.permute.xlu0 %720
          %722 = vrot.lane.b32.xlu0 %v709, 107
          %v723 = vpop.permute.xlu0 %722
          %724 = vrot.lane.b32.xlu0 %v710, 107
          %v725 = vpop.permute.xlu0 %724
          %726 = vrot.lane.b32.xlu0 %v711, 107
          %v727 = vpop.permute.xlu0 %726
          %vm728 = vcmask 875520
          %v729 = vsel %vm728, %v713, %v715
          %v730 = vsel %vm728, %v715, %v717
          %v731 = vsel %vm728, %v717, %v719
          %v732 = vsel %vm728, %v719, %v721
          %v733 = vsel %vm728, %v721, %v723
          %v734 = vsel %vm728, %v723, %v725
          %v735 = vsel %vm728, %v725, %v727
          %743 = vst [vmem:[#allocation2 + $0xa8] sm:$0xf0] %v729
          %744 = vst [vmem:[#allocation2 + $0xb0] sm:$0xf0] %v730
          %745 = vst [vmem:[#allocation2 + $0xb8] sm:$0xf0] %v731
          %746 = vst [vmem:[#allocation2 + $0xc0] sm:$0xf0] %v732
          %747 = vst [vmem:[#allocation2 + $0xc8] sm:$0xf0] %v733
          %748 = vst [vmem:[#allocation2 + $0xd0] sm:$0xf0] %v734
          %749 = vst [vmem:[#allocation2 + $0xd8] sm:$0xf0] %v735
          %v750 = vld [vmem:[%s232] sm:$0xff]
          %v751 = vld [vmem:[%s232 + $0x8] sm:$0xff]
          %v752 = vld [vmem:[%s232 + $0x10] sm:$0xff]
          %v753 = vld [vmem:[%s232 + $0x18] sm:$0xff]
          %758 = vst [vmem:[#allocation1] ss:$2 sm:$0xff] %v750
          %s759 = scalar_lea.vmem [#allocation1], 16
          %760 = vst [vmem:[%s759] ss:$2 sm:$0xff] %v751
          %s761 = scalar_lea.vmem [#allocation1], 32
          %762 = vst [vmem:[%s761] ss:$2 sm:$0xff] %v752
          %s763 = scalar_lea.vmem [#allocation1], 48
          %764 = vst [vmem:[%s763] ss:$2 sm:$0xff] %v753
          %v765 = vld.sshfl [vmem:[#allocation1] sm:$0xff pattern:$0x75316420]
          %v766 = vld.sshfl [vmem:[#allocation1 + $0x8] sm:$0xff pattern:$0x75316420]
          %v767 = vld.sshfl [vmem:[#allocation1 + $0x10] sm:$0xff pattern:$0x75316420]
          %v768 = vld.sshfl [vmem:[#allocation1 + $0x18] sm:$0xff pattern:$0x75316420]
          %v769 = vld.sshfl [vmem:[#allocation1 + $0x20] sm:$0xff pattern:$0x75316420]
          %v770 = vld.sshfl [vmem:[#allocation1 + $0x28] sm:$0xff pattern:$0x75316420]
          %v771 = vld.sshfl [vmem:[#allocation1 + $0x30] sm:$0xff pattern:$0x75316420]
          %v772 = vld.sshfl [vmem:[#allocation1 + $0x38] sm:$0xff pattern:$0x75316420]
          %773 = vrot.lane.b32.xlu0 %v765, 106
          %v774 = vpop.permute.xlu0 %773
          %775 = vrot.lane.b32.xlu0 %v766, 106
          %v776 = vpop.permute.xlu0 %775
          %777 = vrot.lane.b32.xlu0 %v767, 106
          %v778 = vpop.permute.xlu0 %777
          %779 = vrot.lane.b32.xlu0 %v768, 106
          %v780 = vpop.permute.xlu0 %779
          %781 = vrot.lane.b32.xlu0 %v769, 106
          %v782 = vpop.permute.xlu0 %781
          %783 = vrot.lane.b32.xlu0 %v770, 106
          %v784 = vpop.permute.xlu0 %783
          %785 = vrot.lane.b32.xlu0 %v771, 106
          %v786 = vpop.permute.xlu0 %785
          %787 = vrot.lane.b32.xlu0 %v772, 106
          %v788 = vpop.permute.xlu0 %787
          %vm789 = vcmask 867328
          %v790 = vsel %vm789, %v774, %v776
          %v791 = vsel %vm789, %v776, %v778
          %v792 = vsel %vm789, %v778, %v780
          %v793 = vsel %vm789, %v780, %v782
          %v794 = vsel %vm789, %v782, %v784
          %v795 = vsel %vm789, %v784, %v786
          %v796 = vsel %vm789, %v786, %v788
          %804 = vst [vmem:[#allocation2 + $0xe0] sm:$0xf] %v790
          %805 = vst [vmem:[#allocation2 + $0xe8] sm:$0xf] %v791
          %806 = vst [vmem:[#allocation2 + $0xf0] sm:$0xf] %v792
          %807 = vst [vmem:[#allocation2 + $0xf8] sm:$0xf] %v793
          %808 = vst [vmem:[#allocation2 + $0x100] sm:$0xf] %v794
          %809 = vst [vmem:[#allocation2 + $0x108] sm:$0xf] %v795
          %810 = vst [vmem:[#allocation2 + $0x110] sm:$0xf] %v796
          %v811 = vld [vmem:[%s232] sm:$0xff]
          %v812 = vld [vmem:[%s232 + $0x8] sm:$0xff]
          %v813 = vld [vmem:[%s232 + $0x10] sm:$0xff]
          %v814 = vld [vmem:[%s232 + $0x18] sm:$0xff]
          %s819 = scalar_lea.vmem [#allocation1], 1
          %820 = vst [vmem:[%s819] ss:$2 sm:$0xff] %v811
          %s821 = scalar_lea.vmem [#allocation1], 17
          %822 = vst [vmem:[%s821] ss:$2 sm:$0xff] %v812
          %s823 = scalar_lea.vmem [#allocation1], 33
          %824 = vst [vmem:[%s823] ss:$2 sm:$0xff] %v813
          %s825 = scalar_lea.vmem [#allocation1], 49
          %826 = vst [vmem:[%s825] ss:$2 sm:$0xff] %v814
          %v827 = vld.sshfl [vmem:[#allocation1] sm:$0xff pattern:$0x75316420]
          %v828 = vld.sshfl [vmem:[#allocation1 + $0x8] sm:$0xff pattern:$0x75316420]
          %v829 = vld.sshfl [vmem:[#allocation1 + $0x10] sm:$0xff pattern:$0x75316420]
          %v830 = vld.sshfl [vmem:[#allocation1 + $0x18] sm:$0xff pattern:$0x75316420]
          %v831 = vld.sshfl [vmem:[#allocation1 + $0x20] sm:$0xff pattern:$0x75316420]
          %v832 = vld.sshfl [vmem:[#allocation1 + $0x28] sm:$0xff pattern:$0x75316420]
          %v833 = vld.sshfl [vmem:[#allocation1 + $0x30] sm:$0xff pattern:$0x75316420]
          %v834 = vld.sshfl [vmem:[#allocation1 + $0x38] sm:$0xff pattern:$0x75316420]
          %835 = vrot.lane.b32.xlu0 %v827, 28
          %v836 = vpop.permute.xlu0 %835
          %837 = vrot.lane.b32.xlu0 %v828, 28
          %v838 = vpop.permute.xlu0 %837
          %839 = vrot.lane.b32.xlu0 %v829, 28
          %v840 = vpop.permute.xlu0 %839
          %841 = vrot.lane.b32.xlu0 %v830, 28
          %v842 = vpop.permute.xlu0 %841
          %843 = vrot.lane.b32.xlu0 %v831, 28
          %v844 = vpop.permute.xlu0 %843
          %845 = vrot.lane.b32.xlu0 %v832, 28
          %v846 = vpop.permute.xlu0 %845
          %847 = vrot.lane.b32.xlu0 %v833, 28
          %v848 = vpop.permute.xlu0 %847
          %849 = vrot.lane.b32.xlu0 %v834, 28
          %v850 = vpop.permute.xlu0 %849
          %vm851 = vcmask 228352
          %v852 = vsel %vm851, %v836, %v838
          %v853 = vsel %vm851, %v838, %v840
          %v854 = vsel %vm851, %v840, %v842
          %v855 = vsel %vm851, %v842, %v844
          %v856 = vsel %vm851, %v844, %v846
          %v857 = vsel %vm851, %v846, %v848
          %v858 = vsel %vm851, %v848, %v850
          %866 = vst [vmem:[#allocation2 + $0xe0] sm:$0xf0] %v852
          %867 = vst [vmem:[#allocation2 + $0xe8] sm:$0xf0] %v853
          %868 = vst [vmem:[#allocation2 + $0xf0] sm:$0xf0] %v854
          %869 = vst [vmem:[#allocation2 + $0xf8] sm:$0xf0] %v855
          %870 = vst [vmem:[#allocation2 + $0x100] sm:$0xf0] %v856
          %871 = vst [vmem:[#allocation2 + $0x108] sm:$0xf0] %v857
          %872 = vst [vmem:[#allocation2 + $0x110] sm:$0xf0] %v858
          %v873 = vld [vmem:[%s232] sm:$0xff]
          %v874 = vld [vmem:[%s232 + $0x8] sm:$0xff]
          %v875 = vld [vmem:[%s232 + $0x10] sm:$0xff]
          %v876 = vld [vmem:[%s232 + $0x18] sm:$0xff]
          %881 = vst [vmem:[#allocation1] ss:$2 sm:$0xff] %v873
          %s882 = scalar_lea.vmem [#allocation1], 16
          %883 = vst [vmem:[%s882] ss:$2 sm:$0xff] %v874
          %s884 = scalar_lea.vmem [#allocation1], 32
          %885 = vst [vmem:[%s884] ss:$2 sm:$0xff] %v875
          %s886 = scalar_lea.vmem [#allocation1], 48
          %887 = vst [vmem:[%s886] ss:$2 sm:$0xff] %v876
          %v888 = vld.sshfl [vmem:[#allocation1] sm:$0xff pattern:$0x75316420]
          %v889 = vld.sshfl [vmem:[#allocation1 + $0x8] sm:$0xff pattern:$0x75316420]
          %v890 = vld.sshfl [vmem:[#allocation1 + $0x10] sm:$0xff pattern:$0x75316420]
          %v891 = vld.sshfl [vmem:[#allocation1 + $0x18] sm:$0xff pattern:$0x75316420]
          %v892 = vld.sshfl [vmem:[#allocation1 + $0x20] sm:$0xff pattern:$0x75316420]
          %v893 = vld.sshfl [vmem:[#allocation1 + $0x28] sm:$0xff pattern:$0x75316420]
          %v894 = vld.sshfl [vmem:[#allocation1 + $0x30] sm:$0xff pattern:$0x75316420]
          %v895 = vld.sshfl [vmem:[#allocation1 + $0x38] sm:$0xff pattern:$0x75316420]
          %896 = vrot.lane.b32.xlu0 %v888, 27
          %v897 = vpop.permute.xlu0 %896
          %898 = vrot.lane.b32.xlu0 %v889, 27
          %v899 = vpop.permute.xlu0 %898
          %900 = vrot.lane.b32.xlu0 %v890, 27
          %v901 = vpop.permute.xlu0 %900
          %902 = vrot.lane.b32.xlu0 %v891, 27
          %v903 = vpop.permute.xlu0 %902
          %904 = vrot.lane.b32.xlu0 %v892, 27
          %v905 = vpop.permute.xlu0 %904
          %906 = vrot.lane.b32.xlu0 %v893, 27
          %v907 = vpop.permute.xlu0 %906
          %908 = vrot.lane.b32.xlu0 %v894, 27
          %v909 = vpop.permute.xlu0 %908
          %910 = vrot.lane.b32.xlu0 %v895, 27
          %v911 = vpop.permute.xlu0 %910
          %vm912 = vcmask 220160
          %v913 = vsel %vm912, %v897, %v899
          %v914 = vsel %vm912, %v899, %v901
          %v915 = vsel %vm912, %v901, %v903
          %v916 = vsel %vm912, %v903, %v905
          %v917 = vsel %vm912, %v905, %v907
          %v918 = vsel %vm912, %v907, %v909
          %v919 = vsel %vm912, %v909, %v911
          %927 = vst [vmem:[#allocation2 + $0x118] sm:$0xf] %v913
          %928 = vst [vmem:[#allocation2 + $0x120] sm:$0xf] %v914
          %929 = vst [vmem:[#allocation2 + $0x128] sm:$0xf] %v915
          %930 = vst [vmem:[#allocation2 + $0x130] sm:$0xf] %v916
          %931 = vst [vmem:[#allocation2 + $0x138] sm:$0xf] %v917
          %932 = vst [vmem:[#allocation2 + $0x140] sm:$0xf] %v918
          %933 = vst [vmem:[#allocation2 + $0x148] sm:$0xf] %v919
          %v934 = vld [vmem:[%s232] sm:$0xff]
          %v935 = vld [vmem:[%s232 + $0x8] sm:$0xff]
          %v936 = vld [vmem:[%s232 + $0x10] sm:$0xff]
          %v937 = vld [vmem:[%s232 + $0x18] sm:$0xff]
          %s942 = scalar_lea.vmem [#allocation1], 1
          %943 = vst [vmem:[%s942] ss:$2 sm:$0xff] %v934
          %s944 = scalar_lea.vmem [#allocation1], 17
          %945 = vst [vmem:[%s944] ss:$2 sm:$0xff] %v935
          %s946 = scalar_lea.vmem [#allocation1], 33
          %947 = vst [vmem:[%s946] ss:$2 sm:$0xff] %v936
          %s948 = scalar_lea.vmem [#allocation1], 49
          %949 = vst [vmem:[%s948] ss:$2 sm:$0xff] %v937
          %v950 = vld.sshfl [vmem:[#allocation1] sm:$0xff pattern:$0x75316420]
          %v951 = vld.sshfl [vmem:[#allocation1 + $0x8] sm:$0xff pattern:$0x75316420]
          %v952 = vld.sshfl [vmem:[#allocation1 + $0x10] sm:$0xff pattern:$0x75316420]
          %v953 = vld.sshfl [vmem:[#allocation1 + $0x18] sm:$0xff pattern:$0x75316420]
          %v954 = vld.sshfl [vmem:[#allocation1 + $0x20] sm:$0xff pattern:$0x75316420]
          %v955 = vld.sshfl [vmem:[#allocation1 + $0x28] sm:$0xff pattern:$0x75316420]
          %v956 = vld.sshfl [vmem:[#allocation1 + $0x30] sm:$0xff pattern:$0x75316420]
          %v957 = vld.sshfl [vmem:[#allocation1 + $0x38] sm:$0xff pattern:$0x75316420]
          %958 = vrot.lane.b32.xlu0 %v950, 26
          %v959 = vpop.permute.xlu0 %958
          %960 = vrot.lane.b32.xlu0 %v951, 26
          %v961 = vpop.permute.xlu0 %960
          %962 = vrot.lane.b32.xlu0 %v952, 26
          %v963 = vpop.permute.xlu0 %962
          %964 = vrot.lane.b32.xlu0 %v953, 26
          %v965 = vpop.permute.xlu0 %964
          %966 = vrot.lane.b32.xlu0 %v954, 26
          %v967 = vpop.permute.xlu0 %966
          %968 = vrot.lane.b32.xlu0 %v955, 26
          %v969 = vpop.permute.xlu0 %968
          %970 = vrot.lane.b32.xlu0 %v956, 26
          %v971 = vpop.permute.xlu0 %970
          %972 = vrot.lane.b32.xlu0 %v957, 26
          %v973 = vpop.permute.xlu0 %972
          %vm974 = vcmask 211968
          %v975 = vsel %vm974, %v959, %v961
          %v976 = vsel %vm974, %v961, %v963
          %v977 = vsel %vm974, %v963, %v965
          %v978 = vsel %vm974, %v965, %v967
          %v979 = vsel %vm974, %v967, %v969
          %v980 = vsel %vm974, %v969, %v971
          %v981 = vsel %vm974, %v971, %v973
          %989 = vst [vmem:[#allocation2 + $0x118] sm:$0xf0] %v975
          %990 = vst [vmem:[#allocation2 + $0x120] sm:$0xf0] %v976
          %991 = vst [vmem:[#allocation2 + $0x128] sm:$0xf0] %v977
          %992 = vst [vmem:[#allocation2 + $0x130] sm:$0xf0] %v978
          %993 = vst [vmem:[#allocation2 + $0x138] sm:$0xf0] %v979
          %994 = vst [vmem:[#allocation2 + $0x140] sm:$0xf0] %v980
          %995 = vst [vmem:[#allocation2 + $0x148] sm:$0xf0] %v981
          %v996 = vld [vmem:[%s232] sm:$0xff]
          %v997 = vld [vmem:[%s232 + $0x8] sm:$0xff]
          %v998 = vld [vmem:[%s232 + $0x10] sm:$0xff]
          %v999 = vld [vmem:[%s232 + $0x18] sm:$0xff]
          %1004 = vst [vmem:[#allocation1] ss:$2 sm:$0xff] %v996
          %s1005 = scalar_lea.vmem [#allocation1], 16
          %1006 = vst [vmem:[%s1005] ss:$2 sm:$0xff] %v997
          %s1007 = scalar_lea.vmem [#allocation1], 32
          %1008 = vst [vmem:[%s1007] ss:$2 sm:$0xff] %v998
          %s1009 = scalar_lea.vmem [#allocation1], 48
          %1010 = vst [vmem:[%s1009] ss:$2 sm:$0xff] %v999
          %v1011 = vld.sshfl [vmem:[#allocation1] sm:$0xff pattern:$0x75316420]
          %v1012 = vld.sshfl [vmem:[#allocation1 + $0x8] sm:$0xff pattern:$0x75316420]
          %v1013 = vld.sshfl [vmem:[#allocation1 + $0x10] sm:$0xff pattern:$0x75316420]
          %v1014 = vld.sshfl [vmem:[#allocation1 + $0x18] sm:$0xff pattern:$0x75316420]
          %v1015 = vld.sshfl [vmem:[#allocation1 + $0x20] sm:$0xff pattern:$0x75316420]
          %v1016 = vld.sshfl [vmem:[#allocation1 + $0x28] sm:$0xff pattern:$0x75316420]
          %v1017 = vld.sshfl [vmem:[#allocation1 + $0x30] sm:$0xff pattern:$0x75316420]
          %v1018 = vld.sshfl [vmem:[#allocation1 + $0x38] sm:$0xff pattern:$0x75316420]
          %1019 = vrot.lane.b32.xlu0 %v1011, 18
          %v1020 = vpop.permute.xlu0 %1019
          %1021 = vrot.lane.b32.xlu0 %v1012, 18
          %v1022 = vpop.permute.xlu0 %1021
          %1023 = vrot.lane.b32.xlu0 %v1013, 18
          %v1024 = vpop.permute.xlu0 %1023
          %1025 = vrot.lane.b32.xlu0 %v1014, 18
          %v1026 = vpop.permute.xlu0 %1025
          %1027 = vrot.lane.b32.xlu0 %v1015, 18
          %v1028 = vpop.permute.xlu0 %1027
          %1029 = vrot.lane.b32.xlu0 %v1016, 18
          %v1030 = vpop.permute.xlu0 %1029
          %1031 = vrot.lane.b32.xlu0 %v1017, 18
          %v1032 = vpop.permute.xlu0 %1031
          %1033 = vrot.lane.b32.xlu0 %v1018, 18
          %v1034 = vpop.permute.xlu0 %1033
          %vm1035 = vcmask 146432
          %v1036 = vsel %vm1035, %v1020, %v1022
          %v1037 = vsel %vm1035, %v1022, %v1024
          %v1038 = vsel %vm1035, %v1024, %v1026
          %v1039 = vsel %vm1035, %v1026, %v1028
          %v1040 = vsel %vm1035, %v1028, %v1030
          %v1041 = vsel %vm1035, %v1030, %v1032
          %v1042 = vsel %vm1035, %v1032, %v1034
          %1050 = vst [vmem:[#allocation2 + $0x150] sm:$0xf] %v1036
          %1051 = vst [vmem:[#allocation2 + $0x158] sm:$0xf] %v1037
          %1052 = vst [vmem:[#allocation2 + $0x160] sm:$0xf] %v1038
          %1053 = vst [vmem:[#allocation2 + $0x168] sm:$0xf] %v1039
          %1054 = vst [vmem:[#allocation2 + $0x170] sm:$0xf] %v1040
          %1055 = vst [vmem:[#allocation2 + $0x178] sm:$0xf] %v1041
          %1056 = vst [vmem:[#allocation2 + $0x180] sm:$0xf] %v1042
          %v1057 = vld [vmem:[%s232] sm:$0xff]
          %v1058 = vld [vmem:[%s232 + $0x8] sm:$0xff]
          %v1059 = vld [vmem:[%s232 + $0x10] sm:$0xff]
          %v1060 = vld [vmem:[%s232 + $0x18] sm:$0xff]
          %s1065 = scalar_lea.vmem [#allocation1], 1
          %1066 = vst [vmem:[%s1065] ss:$2 sm:$0xff] %v1057
          %s1067 = scalar_lea.vmem [#allocation1], 17
          %1068 = vst [vmem:[%s1067] ss:$2 sm:$0xff] %v1058
          %s1069 = scalar_lea.vmem [#allocation1], 33
          %1070 = vst [vmem:[%s1069] ss:$2 sm:$0xff] %v1059
          %s1071 = scalar_lea.vmem [#allocation1], 49
          %1072 = vst [vmem:[%s1071] ss:$2 sm:$0xff] %v1060
          %v1073 = vld.sshfl [vmem:[#allocation1] sm:$0xff pattern:$0x75316420]
          %v1074 = vld.sshfl [vmem:[#allocation1 + $0x8] sm:$0xff pattern:$0x75316420]
          %v1075 = vld.sshfl [vmem:[#allocation1 + $0x10] sm:$0xff pattern:$0x75316420]
          %v1076 = vld.sshfl [vmem:[#allocation1 + $0x18] sm:$0xff pattern:$0x75316420]
          %v1077 = vld.sshfl [vmem:[#allocation1 + $0x20] sm:$0xff pattern:$0x75316420]
          %v1078 = vld.sshfl [vmem:[#allocation1 + $0x28] sm:$0xff pattern:$0x75316420]
          %v1079 = vld.sshfl [vmem:[#allocation1 + $0x30] sm:$0xff pattern:$0x75316420]
          %v1080 = vld.sshfl [vmem:[#allocation1 + $0x38] sm:$0xff pattern:$0x75316420]
          %1081 = vrot.lane.b32.xlu0 %v1073, 17
          %v1082 = vpop.permute.xlu0 %1081
          %1083 = vrot.lane.b32.xlu0 %v1074, 17
          %v1084 = vpop.permute.xlu0 %1083
          %1085 = vrot.lane.b32.xlu0 %v1075, 17
          %v1086 = vpop.permute.xlu0 %1085
          %1087 = vrot.lane.b32.xlu0 %v1076, 17
          %v1088 = vpop.permute.xlu0 %1087
          %1089 = vrot.lane.b32.xlu0 %v1077, 17
          %v1090 = vpop.permute.xlu0 %1089
          %1091 = vrot.lane.b32.xlu0 %v1078, 17
          %v1092 = vpop.permute.xlu0 %1091
          %1093 = vrot.lane.b32.xlu0 %v1079, 17
          %v1094 = vpop.permute.xlu0 %1093
          %1095 = vrot.lane.b32.xlu0 %v1080, 17
          %v1096 = vpop.permute.xlu0 %1095
          %vm1097 = vcmask 138240
          %v1098 = vsel %vm1097, %v1082, %v1084
          %v1099 = vsel %vm1097, %v1084, %v1086
          %v1100 = vsel %vm1097, %v1086, %v1088
          %v1101 = vsel %vm1097, %v1088, %v1090
          %v1102 = vsel %vm1097, %v1090, %v1092
          %v1103 = vsel %vm1097, %v1092, %v1094
          %v1104 = vsel %vm1097, %v1094, %v1096
          %1112 = vst [vmem:[#allocation2 + $0x150] sm:$0xf0] %v1098
          %1113 = vst [vmem:[#allocation2 + $0x158] sm:$0xf0] %v1099
          %1114 = vst [vmem:[#allocation2 + $0x160] sm:$0xf0] %v1100
          %1115 = vst [vmem:[#allocation2 + $0x168] sm:$0xf0] %v1101
          %1116 = vst [vmem:[#allocation2 + $0x170] sm:$0xf0] %v1102
          %1117 = vst [vmem:[#allocation2 + $0x178] sm:$0xf0] %v1103
          %1118 = vst [vmem:[#allocation2 + $0x180] sm:$0xf0] %v1104
          %v1119 = vld [vmem:[%s232] sm:$0xff]
          %v1120 = vld [vmem:[%s232 + $0x8] sm:$0xff]
          %v1121 = vld [vmem:[%s232 + $0x10] sm:$0xff]
          %v1122 = vld [vmem:[%s232 + $0x18] sm:$0xff]
          %1127 = vst [vmem:[#allocation1] ss:$2 sm:$0xff] %v1119
          %s1128 = scalar_lea.vmem [#allocation1], 16
          %1129 = vst [vmem:[%s1128] ss:$2 sm:$0xff] %v1120
          %s1130 = scalar_lea.vmem [#allocation1], 32
          %1131 = vst [vmem:[%s1130] ss:$2 sm:$0xff] %v1121
          %s1132 = scalar_lea.vmem [#allocation1], 48
          %1133 = vst [vmem:[%s1132] ss:$2 sm:$0xff] %v1122
          %v1134 = vld.sshfl [vmem:[#allocation1] sm:$0xff pattern:$0x75316420]
          %v1135 = vld.sshfl [vmem:[#allocation1 + $0x8] sm:$0xff pattern:$0x75316420]
          %v1136 = vld.sshfl [vmem:[#allocation1 + $0x10] sm:$0xff pattern:$0x75316420]
          %v1137 = vld.sshfl [vmem:[#allocation1 + $0x18] sm:$0xff pattern:$0x75316420]
          %v1138 = vld.sshfl [vmem:[#allocation1 + $0x20] sm:$0xff pattern:$0x75316420]
          %v1139 = vld.sshfl [vmem:[#allocation1 + $0x28] sm:$0xff pattern:$0x75316420]
          %v1140 = vld.sshfl [vmem:[#allocation1 + $0x30] sm:$0xff pattern:$0x75316420]
          %v1141 = vld.sshfl [vmem:[#allocation1 + $0x38] sm:$0xff pattern:$0x75316420]
          %1142 = vrot.lane.b32.xlu0 %v1134, 16
          %v1143 = vpop.permute.xlu0 %1142
          %1144 = vrot.lane.b32.xlu0 %v1135, 16
          %v1145 = vpop.permute.xlu0 %1144
          %1146 = vrot.lane.b32.xlu0 %v1136, 16
          %v1147 = vpop.permute.xlu0 %1146
          %1148 = vrot.lane.b32.xlu0 %v1137, 16
          %v1149 = vpop.permute.xlu0 %1148
          %1150 = vrot.lane.b32.xlu0 %v1138, 16
          %v1151 = vpop.permute.xlu0 %1150
          %1152 = vrot.lane.b32.xlu0 %v1139, 16
          %v1153 = vpop.permute.xlu0 %1152
          %1154 = vrot.lane.b32.xlu0 %v1140, 16
          %v1155 = vpop.permute.xlu0 %1154
          %1156 = vrot.lane.b32.xlu0 %v1141, 16
          %v1157 = vpop.permute.xlu0 %1156
          %vm1158 = vcmask 130048
          %v1159 = vsel %vm1158, %v1143, %v1145
          %v1160 = vsel %vm1158, %v1145, %v1147
          %v1161 = vsel %vm1158, %v1147, %v1149
          %v1162 = vsel %vm1158, %v1149, %v1151
          %v1163 = vsel %vm1158, %v1151, %v1153
          %v1164 = vsel %vm1158, %v1153, %v1155
          %v1165 = vsel %vm1158, %v1155, %v1157
          %1173 = vst [vmem:[#allocation2 + $0x188] sm:$0xf] %v1159
          %1174 = vst [vmem:[#allocation2 + $0x190] sm:$0xf] %v1160
          %1175 = vst [vmem:[#allocation2 + $0x198] sm:$0xf] %v1161
          %1176 = vst [vmem:[#allocation2 + $0x1a0] sm:$0xf] %v1162
          %1177 = vst [vmem:[#allocation2 + $0x1a8] sm:$0xf] %v1163
          %1178 = vst [vmem:[#allocation2 + $0x1b0] sm:$0xf] %v1164
          %1179 = vst [vmem:[#allocation2 + $0x1b8] sm:$0xf] %v1165
          %v1180 = vld [vmem:[%s232] sm:$0xff]
          %v1181 = vld [vmem:[%s232 + $0x8] sm:$0xff]
          %v1182 = vld [vmem:[%s232 + $0x10] sm:$0xff]
          %v1183 = vld [vmem:[%s232 + $0x18] sm:$0xff]
          %s1188 = scalar_lea.vmem [#allocation1], 1
          %1189 = vst [vmem:[%s1188] ss:$2 sm:$0xff] %v1180
          %s1190 = scalar_lea.vmem [#allocation1], 17
          %1191 = vst [vmem:[%s1190] ss:$2 sm:$0xff] %v1181
          %s1192 = scalar_lea.vmem [#allocation1], 33
          %1193 = vst [vmem:[%s1192] ss:$2 sm:$0xff] %v1182
          %s1194 = scalar_lea.vmem [#allocation1], 49
          %1195 = vst [vmem:[%s1194] ss:$2 sm:$0xff] %v1183
          %v1196 = vld.sshfl [vmem:[#allocation1] sm:$0xff pattern:$0x75316420]
          %v1197 = vld.sshfl [vmem:[#allocation1 + $0x8] sm:$0xff pattern:$0x75316420]
          %v1198 = vld.sshfl [vmem:[#allocation1 + $0x10] sm:$0xff pattern:$0x75316420]
          %v1199 = vld.sshfl [vmem:[#allocation1 + $0x18] sm:$0xff pattern:$0x75316420]
          %v1200 = vld.sshfl [vmem:[#allocation1 + $0x20] sm:$0xff pattern:$0x75316420]
          %v1201 = vld.sshfl [vmem:[#allocation1 + $0x28] sm:$0xff pattern:$0x75316420]
          %v1202 = vld.sshfl [vmem:[#allocation1 + $0x30] sm:$0xff pattern:$0x75316420]
          %v1203 = vld.sshfl [vmem:[#allocation1 + $0x38] sm:$0xff pattern:$0x75316420]
          %1204 = vrot.lane.b32.xlu0 %v1196, 8
          %v1205 = vpop.permute.xlu0 %1204
          %1206 = vrot.lane.b32.xlu0 %v1197, 8
          %v1207 = vpop.permute.xlu0 %1206
          %1208 = vrot.lane.b32.xlu0 %v1198, 8
          %v1209 = vpop.permute.xlu0 %1208
          %1210 = vrot.lane.b32.xlu0 %v1199, 8
          %v1211 = vpop.permute.xlu0 %1210
          %1212 = vrot.lane.b32.xlu0 %v1200, 8
          %v1213 = vpop.permute.xlu0 %1212
          %1214 = vrot.lane.b32.xlu0 %v1201, 8
          %v1215 = vpop.permute.xlu0 %1214
          %1216 = vrot.lane.b32.xlu0 %v1202, 8
          %v1217 = vpop.permute.xlu0 %1216
          %1218 = vrot.lane.b32.xlu0 %v1203, 8
          %v1219 = vpop.permute.xlu0 %1218
          %vm1220 = vcmask 64512
          %v1221 = vsel %vm1220, %v1205, %v1207
          %v1222 = vsel %vm1220, %v1207, %v1209
          %v1223 = vsel %vm1220, %v1209, %v1211
          %v1224 = vsel %vm1220, %v1211, %v1213
          %v1225 = vsel %vm1220, %v1213, %v1215
          %v1226 = vsel %vm1220, %v1215, %v1217
          %v1227 = vsel %vm1220, %v1217, %v1219
          %1235 = vst [vmem:[#allocation2 + $0x188] sm:$0xf0] %v1221
          %1236 = vst [vmem:[#allocation2 + $0x190] sm:$0xf0] %v1222
          %1237 = vst [vmem:[#allocation2 + $0x198] sm:$0xf0] %v1223
          %1238 = vst [vmem:[#allocation2 + $0x1a0] sm:$0xf0] %v1224
          %1239 = vst [vmem:[#allocation2 + $0x1a8] sm:$0xf0] %v1225
          %1240 = vst [vmem:[#allocation2 + $0x1b0] sm:$0xf0] %v1226
          %1241 = vst [vmem:[#allocation2 + $0x1b8] sm:$0xf0] %v1227
          %v1242 = vld [vmem:[%s232] sm:$0xff]
          %v1243 = vld [vmem:[%s232 + $0x8] sm:$0xff]
          %v1244 = vld [vmem:[%s232 + $0x10] sm:$0xff]
          %v1245 = vld [vmem:[%s232 + $0x18] sm:$0xff]
          %1250 = vst [vmem:[#allocation1] ss:$2 sm:$0xff] %v1242
          %s1251 = scalar_lea.vmem [#allocation1], 16
          %1252 = vst [vmem:[%s1251] ss:$2 sm:$0xff] %v1243
          %s1253 = scalar_lea.vmem [#allocation1], 32
          %1254 = vst [vmem:[%s1253] ss:$2 sm:$0xff] %v1244
          %s1255 = scalar_lea.vmem [#allocation1], 48
          %1256 = vst [vmem:[%s1255] ss:$2 sm:$0xff] %v1245
          %v1257 = vld.sshfl [vmem:[#allocation1] sm:$0xff pattern:$0x75316420]
          %v1258 = vld.sshfl [vmem:[#allocation1 + $0x8] sm:$0xff pattern:$0x75316420]
          %v1259 = vld.sshfl [vmem:[#allocation1 + $0x10] sm:$0xff pattern:$0x75316420]
          %v1260 = vld.sshfl [vmem:[#allocation1 + $0x18] sm:$0xff pattern:$0x75316420]
          %v1261 = vld.sshfl [vmem:[#allocation1 + $0x20] sm:$0xff pattern:$0x75316420]
          %v1262 = vld.sshfl [vmem:[#allocation1 + $0x28] sm:$0xff pattern:$0x75316420]
          %v1263 = vld.sshfl [vmem:[#allocation1 + $0x30] sm:$0xff pattern:$0x75316420]
          %v1264 = vld.sshfl [vmem:[#allocation1 + $0x38] sm:$0xff pattern:$0x75316420]
          %1265 = vrot.lane.b32.xlu0 %v1257, 7
          %v1266 = vpop.permute.xlu0 %1265
          %1267 = vrot.lane.b32.xlu0 %v1258, 7
          %v1268 = vpop.permute.xlu0 %1267
          %1269 = vrot.lane.b32.xlu0 %v1259, 7
          %v1270 = vpop.permute.xlu0 %1269
          %1271 = vrot.lane.b32.xlu0 %v1260, 7
          %v1272 = vpop.permute.xlu0 %1271
          %1273 = vrot.lane.b32.xlu0 %v1261, 7
          %v1274 = vpop.permute.xlu0 %1273
          %1275 = vrot.lane.b32.xlu0 %v1262, 7
          %v1276 = vpop.permute.xlu0 %1275
          %1277 = vrot.lane.b32.xlu0 %v1263, 7
          %v1278 = vpop.permute.xlu0 %1277
          %1279 = vrot.lane.b32.xlu0 %v1264, 7
          %v1280 = vpop.permute.xlu0 %1279
          %vm1281 = vcmask 56320
          %v1282 = vsel %vm1281, %v1266, %v1268
          %v1283 = vsel %vm1281, %v1268, %v1270
          %v1284 = vsel %vm1281, %v1270, %v1272
          %v1285 = vsel %vm1281, %v1272, %v1274
          %v1286 = vsel %vm1281, %v1274, %v1276
          %v1287 = vsel %vm1281, %v1276, %v1278
          %v1288 = vsel %vm1281, %v1278, %v1280
          %1296 = vst [vmem:[#allocation2 + $0x1c0] sm:$0xf] %v1282
          %1297 = vst [vmem:[#allocation2 + $0x1c8] sm:$0xf] %v1283
          %1298 = vst [vmem:[#allocation2 + $0x1d0] sm:$0xf] %v1284
          %1299 = vst [vmem:[#allocation2 + $0x1d8] sm:$0xf] %v1285
          %1300 = vst [vmem:[#allocation2 + $0x1e0] sm:$0xf] %v1286
          %1301 = vst [vmem:[#allocation2 + $0x1e8] sm:$0xf] %v1287
          %1302 = vst [vmem:[#allocation2 + $0x1f0] sm:$0xf] %v1288
          %v1303 = vld [vmem:[%s232] sm:$0xff]
          %v1304 = vld [vmem:[%s232 + $0x8] sm:$0xff]
          %v1305 = vld [vmem:[%s232 + $0x10] sm:$0xff]
          %v1306 = vld [vmem:[%s232 + $0x18] sm:$0xff]
          %s1311 = scalar_lea.vmem [#allocation1], 1
          %1312 = vst [vmem:[%s1311] ss:$2 sm:$0xff] %v1303
          %s1313 = scalar_lea.vmem [#allocation1], 17
          %1314 = vst [vmem:[%s1313] ss:$2 sm:$0xff] %v1304
          %s1315 = scalar_lea.vmem [#allocation1], 33
          %1316 = vst [vmem:[%s1315] ss:$2 sm:$0xff] %v1305
          %s1317 = scalar_lea.vmem [#allocation1], 49
          %1318 = vst [vmem:[%s1317] ss:$2 sm:$0xff] %v1306
          %v1319 = vld.sshfl [vmem:[#allocation1] sm:$0xff pattern:$0x75316420]
          %v1320 = vld.sshfl [vmem:[#allocation1 + $0x8] sm:$0xff pattern:$0x75316420]
          %v1321 = vld.sshfl [vmem:[#allocation1 + $0x10] sm:$0xff pattern:$0x75316420]
          %v1322 = vld.sshfl [vmem:[#allocation1 + $0x18] sm:$0xff pattern:$0x75316420]
          %v1323 = vld.sshfl [vmem:[#allocation1 + $0x20] sm:$0xff pattern:$0x75316420]
          %v1324 = vld.sshfl [vmem:[#allocation1 + $0x28] sm:$0xff pattern:$0x75316420]
          %v1325 = vld.sshfl [vmem:[#allocation1 + $0x30] sm:$0xff pattern:$0x75316420]
          %v1326 = vld.sshfl [vmem:[#allocation1 + $0x38] sm:$0xff pattern:$0x75316420]
          %1327 = vrot.lane.b32.xlu0 %v1319, 6
          %v1328 = vpop.permute.xlu0 %1327
          %1329 = vrot.lane.b32.xlu0 %v1320, 6
          %v1330 = vpop.permute.xlu0 %1329
          %1331 = vrot.lane.b32.xlu0 %v1321, 6
          %v1332 = vpop.permute.xlu0 %1331
          %1333 = vrot.lane.b32.xlu0 %v1322, 6
          %v1334 = vpop.permute.xlu0 %1333
          %1335 = vrot.lane.b32.xlu0 %v1323, 6
          %v1336 = vpop.permute.xlu0 %1335
          %1337 = vrot.lane.b32.xlu0 %v1324, 6
          %v1338 = vpop.permute.xlu0 %1337
          %1339 = vrot.lane.b32.xlu0 %v1325, 6
          %v1340 = vpop.permute.xlu0 %1339
          %1341 = vrot.lane.b32.xlu0 %v1326, 6
          %v1342 = vpop.permute.xlu0 %1341
          %vm1343 = vcmask 48128
          %v1344 = vsel %vm1343, %v1328, %v1330
          %v1345 = vsel %vm1343, %v1330, %v1332
          %v1346 = vsel %vm1343, %v1332, %v1334
          %v1347 = vsel %vm1343, %v1334, %v1336
          %v1348 = vsel %vm1343, %v1336, %v1338
          %v1349 = vsel %vm1343, %v1338, %v1340
          %v1350 = vsel %vm1343, %v1340, %v1342
          %1358 = vst [vmem:[#allocation2 + $0x1c0] sm:$0xf0] %v1344
          %1359 = vst [vmem:[#allocation2 + $0x1c8] sm:$0xf0] %v1345
          %1360 = vst [vmem:[#allocation2 + $0x1d0] sm:$0xf0] %v1346
          %1361 = vst [vmem:[#allocation2 + $0x1d8] sm:$0xf0] %v1347
          %1362 = vst [vmem:[#allocation2 + $0x1e0] sm:$0xf0] %v1348
          %1363 = vst [vmem:[#allocation2 + $0x1e8] sm:$0xf0] %v1349
          %1364 = vst [vmem:[#allocation2 + $0x1f0] sm:$0xf0] %v1350
          %v1365 = vld [vmem:[%s232 + $0x4] sm:$0xff]
          %v1366 = vld [vmem:[%s232 + $0xc] sm:$0xff]
          %v1367 = vld [vmem:[%s232 + $0x14] sm:$0xff]
          %v1368 = vld [vmem:[%s232 + $0x1c] sm:$0xff]
          %1373 = vst [vmem:[#allocation1] ss:$2 sm:$0xff] %v1365
          %s1374 = scalar_lea.vmem [#allocation1], 16
          %1375 = vst [vmem:[%s1374] ss:$2 sm:$0xff] %v1366
          %s1376 = scalar_lea.vmem [#allocation1], 32
          %1377 = vst [vmem:[%s1376] ss:$2 sm:$0xff] %v1367
          %s1378 = scalar_lea.vmem [#allocation1], 48
          %1379 = vst [vmem:[%s1378] ss:$2 sm:$0xff] %v1368
          %v1380 = vld.sshfl [vmem:[#allocation1] sm:$0xff pattern:$0x75316420]
          %v1381 = vld.sshfl [vmem:[#allocation1 + $0x8] sm:$0xff pattern:$0x75316420]
          %v1382 = vld.sshfl [vmem:[#allocation1 + $0x10] sm:$0xff pattern:$0x75316420]
          %v1383 = vld.sshfl [vmem:[#allocation1 + $0x18] sm:$0xff pattern:$0x75316420]
          %v1384 = vld.sshfl [vmem:[#allocation1 + $0x20] sm:$0xff pattern:$0x75316420]
          %v1385 = vld.sshfl [vmem:[#allocation1 + $0x28] sm:$0xff pattern:$0x75316420]
          %v1386 = vld.sshfl [vmem:[#allocation1 + $0x30] sm:$0xff pattern:$0x75316420]
          %v1387 = vld.sshfl [vmem:[#allocation1 + $0x38] sm:$0xff pattern:$0x75316420]
          %1388 = vrot.lane.b32.xlu0 %v1380, 56
          %v1389 = vpop.permute.xlu0 %1388
          %1390 = vrot.lane.b32.xlu0 %v1381, 56
          %v1391 = vpop.permute.xlu0 %1390
          %1392 = vrot.lane.b32.xlu0 %v1382, 56
          %v1393 = vpop.permute.xlu0 %1392
          %1394 = vrot.lane.b32.xlu0 %v1383, 56
          %v1395 = vpop.permute.xlu0 %1394
          %1396 = vrot.lane.b32.xlu0 %v1384, 56
          %v1397 = vpop.permute.xlu0 %1396
          %1398 = vrot.lane.b32.xlu0 %v1385, 56
          %v1399 = vpop.permute.xlu0 %1398
          %1400 = vrot.lane.b32.xlu0 %v1386, 56
          %v1401 = vpop.permute.xlu0 %1400
          %1402 = vrot.lane.b32.xlu0 %v1387, 56
          %v1403 = vpop.permute.xlu0 %1402
          %vm1404 = vcmask 457728
          %v1405 = vsel %vm1404, %v1389, %v1391
          %v1406 = vsel %vm1404, %v1391, %v1393
          %v1407 = vsel %vm1404, %v1393, %v1395
          %v1408 = vsel %vm1404, %v1395, %v1397
          %v1409 = vsel %vm1404, %v1397, %v1399
          %v1410 = vsel %vm1404, %v1399, %v1401
          %v1411 = vsel %vm1404, %v1401, %v1403
          %1419 = vst [vmem:[#allocation2 + $0x1f8] sm:$0xf] %v1405
          %1420 = vst [vmem:[#allocation2 + $0x200] sm:$0xf] %v1406
          %1421 = vst [vmem:[#allocation2 + $0x208] sm:$0xf] %v1407
          %1422 = vst [vmem:[#allocation2 + $0x210] sm:$0xf] %v1408
          %1423 = vst [vmem:[#allocation2 + $0x218] sm:$0xf] %v1409
          %1424 = vst [vmem:[#allocation2 + $0x220] sm:$0xf] %v1410
          %1425 = vst [vmem:[#allocation2 + $0x228] sm:$0xf] %v1411
          %v1426 = vld [vmem:[%s232 + $0x4] sm:$0xff]
          %v1427 = vld [vmem:[%s232 + $0xc] sm:$0xff]
          %v1428 = vld [vmem:[%s232 + $0x14] sm:$0xff]
          %v1429 = vld [vmem:[%s232 + $0x1c] sm:$0xff]
          %s1434 = scalar_lea.vmem [#allocation1], 1
          %1435 = vst [vmem:[%s1434] ss:$2 sm:$0xff] %v1426
          %s1436 = scalar_lea.vmem [#allocation1], 17
          %1437 = vst [vmem:[%s1436] ss:$2 sm:$0xff] %v1427
          %s1438 = scalar_lea.vmem [#allocation1], 33
          %1439 = vst [vmem:[%s1438] ss:$2 sm:$0xff] %v1428
          %s1440 = scalar_lea.vmem [#allocation1], 49
          %1441 = vst [vmem:[%s1440] ss:$2 sm:$0xff] %v1429
          %v1442 = vld.sshfl [vmem:[#allocation1] sm:$0xff pattern:$0x75316420]
          %v1443 = vld.sshfl [vmem:[#allocation1 + $0x8] sm:$0xff pattern:$0x75316420]
          %v1444 = vld.sshfl [vmem:[#allocation1 + $0x10] sm:$0xff pattern:$0x75316420]
          %v1445 = vld.sshfl [vmem:[#allocation1 + $0x18] sm:$0xff pattern:$0x75316420]
          %v1446 = vld.sshfl [vmem:[#allocation1 + $0x20] sm:$0xff pattern:$0x75316420]
          %v1447 = vld.sshfl [vmem:[#allocation1 + $0x28] sm:$0xff pattern:$0x75316420]
          %v1448 = vld.sshfl [vmem:[#allocation1 + $0x30] sm:$0xff pattern:$0x75316420]
          %v1449 = vld.sshfl [vmem:[#allocation1 + $0x38] sm:$0xff pattern:$0x75316420]
          %1450 = vrot.lane.b32.xlu0 %v1442, 55
          %v1451 = vpop.permute.xlu0 %1450
          %1452 = vrot.lane.b32.xlu0 %v1443, 55
          %v1453 = vpop.permute.xlu0 %1452
          %1454 = vrot.lane.b32.xlu0 %v1444, 55
          %v1455 = vpop.permute.xlu0 %1454
          %1456 = vrot.lane.b32.xlu0 %v1445, 55
          %v1457 = vpop.permute.xlu0 %1456
          %1458 = vrot.lane.b32.xlu0 %v1446, 55
          %v1459 = vpop.permute.xlu0 %1458
          %1460 = vrot.lane.b32.xlu0 %v1447, 55
          %v1461 = vpop.permute.xlu0 %1460
          %1462 = vrot.lane.b32.xlu0 %v1448, 55
          %v1463 = vpop.permute.xlu0 %1462
          %1464 = vrot.lane.b32.xlu0 %v1449, 55
          %v1465 = vpop.permute.xlu0 %1464
          %vm1466 = vcmask 449536
          %v1467 = vsel %vm1466, %v1451, %v1453
          %v1468 = vsel %vm1466, %v1453, %v1455
          %v1469 = vsel %vm1466, %v1455, %v1457
          %v1470 = vsel %vm1466, %v1457, %v1459
          %v1471 = vsel %vm1466, %v1459, %v1461
          %v1472 = vsel %vm1466, %v1461, %v1463
          %v1473 = vsel %vm1466, %v1463, %v1465
          %1481 = vst [vmem:[#allocation2 + $0x1f8] sm:$0xf0] %v1467
          %1482 = vst [vmem:[#allocation2 + $0x200] sm:$0xf0] %v1468
          %1483 = vst [vmem:[#allocation2 + $0x208] sm:$0xf0] %v1469
          %1484 = vst [vmem:[#allocation2 + $0x210] sm:$0xf0] %v1470
          %1485 = vst [vmem:[#allocation2 + $0x218] sm:$0xf0] %v1471
          %1486 = vst [vmem:[#allocation2 + $0x220] sm:$0xf0] %v1472
          %1487 = vst [vmem:[#allocation2 + $0x228] sm:$0xf0] %v1473
          %v1488 = vld [vmem:[%s232 + $0x4] sm:$0xff]
          %v1489 = vld [vmem:[%s232 + $0xc] sm:$0xff]
          %v1490 = vld [vmem:[%s232 + $0x14] sm:$0xff]
          %v1491 = vld [vmem:[%s232 + $0x1c] sm:$0xff]
          %1496 = vst [vmem:[#allocation1] ss:$2 sm:$0xff] %v1488
          %s1497 = scalar_lea.vmem [#allocation1], 16
          %1498 = vst [vmem:[%s1497] ss:$2 sm:$0xff] %v1489
          %s1499 = scalar_lea.vmem [#allocation1], 32
          %1500 = vst [vmem:[%s1499] ss:$2 sm:$0xff] %v1490
          %s1501 = scalar_lea.vmem [#allocation1], 48
          %1502 = vst [vmem:[%s1501] ss:$2 sm:$0xff] %v1491
          %v1503 = vld.sshfl [vmem:[#allocation1] sm:$0xff pattern:$0x75316420]
          %v1504 = vld.sshfl [vmem:[#allocation1 + $0x8] sm:$0xff pattern:$0x75316420]
          %v1505 = vld.sshfl [vmem:[#allocation1 + $0x10] sm:$0xff pattern:$0x75316420]
          %v1506 = vld.sshfl [vmem:[#allocation1 + $0x18] sm:$0xff pattern:$0x75316420]
          %v1507 = vld.sshfl [vmem:[#allocation1 + $0x20] sm:$0xff pattern:$0x75316420]
          %v1508 = vld.sshfl [vmem:[#allocation1 + $0x28] sm:$0xff pattern:$0x75316420]
          %v1509 = vld.sshfl [vmem:[#allocation1 + $0x30] sm:$0xff pattern:$0x75316420]
          %v1510 = vld.sshfl [vmem:[#allocation1 + $0x38] sm:$0xff pattern:$0x75316420]
          %1511 = vrot.lane.b32.xlu0 %v1503, 54
          %v1512 = vpop.permute.xlu0 %1511
          %1513 = vrot.lane.b32.xlu0 %v1504, 54
          %v1514 = vpop.permute.xlu0 %1513
          %1515 = vrot.lane.b32.xlu0 %v1505, 54
          %v1516 = vpop.permute.xlu0 %1515
          %1517 = vrot.lane.b32.xlu0 %v1506, 54
          %v1518 = vpop.permute.xlu0 %1517
          %1519 = vrot.lane.b32.xlu0 %v1507, 54
          %v1520 = vpop.permute.xlu0 %1519
          %1521 = vrot.lane.b32.xlu0 %v1508, 54
          %v1522 = vpop.permute.xlu0 %1521
          %1523 = vrot.lane.b32.xlu0 %v1509, 54
          %v1524 = vpop.permute.xlu0 %1523
          %1525 = vrot.lane.b32.xlu0 %v1510, 54
          %v1526 = vpop.permute.xlu0 %1525
          %vm1527 = vcmask 441344
          %v1528 = vsel %vm1527, %v1512, %v1514
          %v1529 = vsel %vm1527, %v1514, %v1516
          %v1530 = vsel %vm1527, %v1516, %v1518
          %v1531 = vsel %vm1527, %v1518, %v1520
          %v1532 = vsel %vm1527, %v1520, %v1522
          %v1533 = vsel %vm1527, %v1522, %v1524
          %v1534 = vsel %vm1527, %v1524, %v1526
          %1542 = vst [vmem:[#allocation2 + $0x230] sm:$0xf] %v1528
          %1543 = vst [vmem:[#allocation2 + $0x238] sm:$0xf] %v1529
          %1544 = vst [vmem:[#allocation2 + $0x240] sm:$0xf] %v1530
          %1545 = vst [vmem:[#allocation2 + $0x248] sm:$0xf] %v1531
          %1546 = vst [vmem:[#allocation2 + $0x250] sm:$0xf] %v1532
          %1547 = vst [vmem:[#allocation2 + $0x258] sm:$0xf] %v1533
          %1548 = vst [vmem:[#allocation2 + $0x260] sm:$0xf] %v1534
          %v1549 = vld [vmem:[%s232 + $0x4] sm:$0xff]
          %v1550 = vld [vmem:[%s232 + $0xc] sm:$0xff]
          %v1551 = vld [vmem:[%s232 + $0x14] sm:$0xff]
          %v1552 = vld [vmem:[%s232 + $0x1c] sm:$0xff]
          %s1557 = scalar_lea.vmem [#allocation1], 1
          %1558 = vst [vmem:[%s1557] ss:$2 sm:$0xff] %v1549
          %s1559 = scalar_lea.vmem [#allocation1], 17
          %1560 = vst [vmem:[%s1559] ss:$2 sm:$0xff] %v1550
          %s1561 = scalar_lea.vmem [#allocation1], 33
          %1562 = vst [vmem:[%s1561] ss:$2 sm:$0xff] %v1551
          %s1563 = scalar_lea.vmem [#allocation1], 49
          %1564 = vst [vmem:[%s1563] ss:$2 sm:$0xff] %v1552
          %v1565 = vld.sshfl [vmem:[#allocation1] sm:$0xff pattern:$0x75316420]
          %v1566 = vld.sshfl [vmem:[#allocation1 + $0x8] sm:$0xff pattern:$0x75316420]
          %v1567 = vld.sshfl [vmem:[#allocation1 + $0x10] sm:$0xff pattern:$0x75316420]
          %v1568 = vld.sshfl [vmem:[#allocation1 + $0x18] sm:$0xff pattern:$0x75316420]
          %v1569 = vld.sshfl [vmem:[#allocation1 + $0x20] sm:$0xff pattern:$0x75316420]
          %v1570 = vld.sshfl [vmem:[#allocation1 + $0x28] sm:$0xff pattern:$0x75316420]
          %v1571 = vld.sshfl [vmem:[#allocation1 + $0x30] sm:$0xff pattern:$0x75316420]
          %v1572 = vld.sshfl [vmem:[#allocation1 + $0x38] sm:$0xff pattern:$0x75316420]
          %1573 = vrot.lane.b32.xlu0 %v1565, 46
          %v1574 = vpop.permute.xlu0 %1573
          %1575 = vrot.lane.b32.xlu0 %v1566, 46
          %v1576 = vpop.permute.xlu0 %1575
          %1577 = vrot.lane.b32.xlu0 %v1567, 46
          %v1578 = vpop.permute.xlu0 %1577
          %1579 = vrot.lane.b32.xlu0 %v1568, 46
          %v1580 = vpop.permute.xlu0 %1579
          %1581 = vrot.lane.b32.xlu0 %v1569, 46
          %v1582 = vpop.permute.xlu0 %1581
          %1583 = vrot.lane.b32.xlu0 %v1570, 46
          %v1584 = vpop.permute.xlu0 %1583
          %1585 = vrot.lane.b32.xlu0 %v1571, 46
          %v1586 = vpop.permute.xlu0 %1585
          %1587 = vrot.lane.b32.xlu0 %v1572, 46
          %v1588 = vpop.permute.xlu0 %1587
          %vm1589 = vcmask 375808
          %v1590 = vsel %vm1589, %v1574, %v1576
          %v1591 = vsel %vm1589, %v1576, %v1578
          %v1592 = vsel %vm1589, %v1578, %v1580
          %v1593 = vsel %vm1589, %v1580, %v1582
          %v1594 = vsel %vm1589, %v1582, %v1584
          %v1595 = vsel %vm1589, %v1584, %v1586
          %v1596 = vsel %vm1589, %v1586, %v1588
          %1604 = vst [vmem:[#allocation2 + $0x230] sm:$0xf0] %v1590
          %1605 = vst [vmem:[#allocation2 + $0x238] sm:$0xf0] %v1591
          %1606 = vst [vmem:[#allocation2 + $0x240] sm:$0xf0] %v1592
          %1607 = vst [vmem:[#allocation2 + $0x248] sm:$0xf0] %v1593
          %1608 = vst [vmem:[#allocation2 + $0x250] sm:$0xf0] %v1594
          %1609 = vst [vmem:[#allocation2 + $0x258] sm:$0xf0] %v1595
          %1610 = vst [vmem:[#allocation2 + $0x260] sm:$0xf0] %v1596
          %v1611 = vld [vmem:[%s232 + $0x4] sm:$0xff]
          %v1612 = vld [vmem:[%s232 + $0xc] sm:$0xff]
          %v1613 = vld [vmem:[%s232 + $0x14] sm:$0xff]
          %v1614 = vld [vmem:[%s232 + $0x1c] sm:$0xff]
          %1619 = vst [vmem:[#allocation1] ss:$2 sm:$0xff] %v1611
          %s1620 = scalar_lea.vmem [#allocation1], 16
          %1621 = vst [vmem:[%s1620] ss:$2 sm:$0xff] %v1612
          %s1622 = scalar_lea.vmem [#allocation1], 32
          %1623 = vst [vmem:[%s1622] ss:$2 sm:$0xff] %v1613
          %s1624 = scalar_lea.vmem [#allocation1], 48
          %1625 = vst [vmem:[%s1624] ss:$2 sm:$0xff] %v1614
          %v1626 = vld.sshfl [vmem:[#allocation1] sm:$0xff pattern:$0x75316420]
          %v1627 = vld.sshfl [vmem:[#allocation1 + $0x8] sm:$0xff pattern:$0x75316420]
          %v1628 = vld.sshfl [vmem:[#allocation1 + $0x10] sm:$0xff pattern:$0x75316420]
          %v1629 = vld.sshfl [vmem:[#allocation1 + $0x18] sm:$0xff pattern:$0x75316420]
          %v1630 = vld.sshfl [vmem:[#allocation1 + $0x20] sm:$0xff pattern:$0x75316420]
          %v1631 = vld.sshfl [vmem:[#allocation1 + $0x28] sm:$0xff pattern:$0x75316420]
          %v1632 = vld.sshfl [vmem:[#allocation1 + $0x30] sm:$0xff pattern:$0x75316420]
          %v1633 = vld.sshfl [vmem:[#allocation1 + $0x38] sm:$0xff pattern:$0x75316420]
          %1634 = vrot.lane.b32.xlu0 %v1626, 45
          %v1635 = vpop.permute.xlu0 %1634
          %1636 = vrot.lane.b32.xlu0 %v1627, 45
          %v1637 = vpop.permute.xlu0 %1636
          %1638 = vrot.lane.b32.xlu0 %v1628, 45
          %v1639 = vpop.permute.xlu0 %1638
          %1640 = vrot.lane.b32.xlu0 %v1629, 45
          %v1641 = vpop.permute.xlu0 %1640
          %1642 = vrot.lane.b32.xlu0 %v1630, 45
          %v1643 = vpop.permute.xlu0 %1642
          %1644 = vrot.lane.b32.xlu0 %v1631, 45
          %v1645 = vpop.permute.xlu0 %1644
          %1646 = vrot.lane.b32.xlu0 %v1632, 45
          %v1647 = vpop.permute.xlu0 %1646
          %1648 = vrot.lane.b32.xlu0 %v1633, 45
          %v1649 = vpop.permute.xlu0 %1648
          %vm1650 = vcmask 367616
          %v1651 = vsel %vm1650, %v1635, %v1637
          %v1652 = vsel %vm1650, %v1637, %v1639
          %v1653 = vsel %vm1650, %v1639, %v1641
          %v1654 = vsel %vm1650, %v1641, %v1643
          %v1655 = vsel %vm1650, %v1643, %v1645
          %v1656 = vsel %vm1650, %v1645, %v1647
          %v1657 = vsel %vm1650, %v1647, %v1649
          %1665 = vst [vmem:[#allocation2 + $0x268] sm:$0xf] %v1651
          %1666 = vst [vmem:[#allocation2 + $0x270] sm:$0xf] %v1652
          %1667 = vst [vmem:[#allocation2 + $0x278] sm:$0xf] %v1653
          %1668 = vst [vmem:[#allocation2 + $0x280] sm:$0xf] %v1654
          %1669 = vst [vmem:[#allocation2 + $0x288] sm:$0xf] %v1655
          %1670 = vst [vmem:[#allocation2 + $0x290] sm:$0xf] %v1656
          %1671 = vst [vmem:[#allocation2 + $0x298] sm:$0xf] %v1657
          %v1672 = vld [vmem:[%s232 + $0x4] sm:$0xff]
          %v1673 = vld [vmem:[%s232 + $0xc] sm:$0xff]
          %v1674 = vld [vmem:[%s232 + $0x14] sm:$0xff]
          %v1675 = vld [vmem:[%s232 + $0x1c] sm:$0xff]
          %s1680 = scalar_lea.vmem [#allocation1], 1
          %1681 = vst [vmem:[%s1680] ss:$2 sm:$0xff] %v1672
          %s1682 = scalar_lea.vmem [#allocation1], 17
          %1683 = vst [vmem:[%s1682] ss:$2 sm:$0xff] %v1673
          %s1684 = scalar_lea.vmem [#allocation1], 33
          %1685 = vst [vmem:[%s1684] ss:$2 sm:$0xff] %v1674
          %s1686 = scalar_lea.vmem [#allocation1], 49
          %1687 = vst [vmem:[%s1686] ss:$2 sm:$0xff] %v1675
          %v1688 = vld.sshfl [vmem:[#allocation1] sm:$0xff pattern:$0x75316420]
          %v1689 = vld.sshfl [vmem:[#allocation1 + $0x8] sm:$0xff pattern:$0x75316420]
          %v1690 = vld.sshfl [vmem:[#allocation1 + $0x10] sm:$0xff pattern:$0x75316420]
          %v1691 = vld.sshfl [vmem:[#allocation1 + $0x18] sm:$0xff pattern:$0x75316420]
          %v1692 = vld.sshfl [vmem:[#allocation1 + $0x20] sm:$0xff pattern:$0x75316420]
          %v1693 = vld.sshfl [vmem:[#allocation1 + $0x28] sm:$0xff pattern:$0x75316420]
          %v1694 = vld.sshfl [vmem:[#allocation1 + $0x30] sm:$0xff pattern:$0x75316420]
          %v1695 = vld.sshfl [vmem:[#allocation1 + $0x38] sm:$0xff pattern:$0x75316420]
          %1696 = vrot.lane.b32.xlu0 %v1688, 44
          %v1697 = vpop.permute.xlu0 %1696
          %1698 = vrot.lane.b32.xlu0 %v1689, 44
          %v1699 = vpop.permute.xlu0 %1698
          %1700 = vrot.lane.b32.xlu0 %v1690, 44
          %v1701 = vpop.permute.xlu0 %1700
          %1702 = vrot.lane.b32.xlu0 %v1691, 44
          %v1703 = vpop.permute.xlu0 %1702
          %1704 = vrot.lane.b32.xlu0 %v1692, 44
          %v1705 = vpop.permute.xlu0 %1704
          %1706 = vrot.lane.b32.xlu0 %v1693, 44
          %v1707 = vpop.permute.xlu0 %1706
          %1708 = vrot.lane.b32.xlu0 %v1694, 44
          %v1709 = vpop.permute.xlu0 %1708
          %1710 = vrot.lane.b32.xlu0 %v1695, 44
          %v1711 = vpop.permute.xlu0 %1710
          %vm1712 = vcmask 359424
          %v1713 = vsel %vm1712, %v1697, %v1699
          %v1714 = vsel %vm1712, %v1699, %v1701
          %v1715 = vsel %vm1712, %v1701, %v1703
          %v1716 = vsel %vm1712, %v1703, %v1705
          %v1717 = vsel %vm1712, %v1705, %v1707
          %v1718 = vsel %vm1712, %v1707, %v1709
          %v1719 = vsel %vm1712, %v1709, %v1711
          %1727 = vst [vmem:[#allocation2 + $0x268] sm:$0xf0] %v1713
          %1728 = vst [vmem:[#allocation2 + $0x270] sm:$0xf0] %v1714
          %1729 = vst [vmem:[#allocation2 + $0x278] sm:$0xf0] %v1715
          %1730 = vst [vmem:[#allocation2 + $0x280] sm:$0xf0] %v1716
          %1731 = vst [vmem:[#allocation2 + $0x288] sm:$0xf0] %v1717
          %1732 = vst [vmem:[#allocation2 + $0x290] sm:$0xf0] %v1718
          %1733 = vst [vmem:[#allocation2 + $0x298] sm:$0xf0] %v1719
          %v1734 = vld [vmem:[%s232 + $0x4] sm:$0xff]
          %v1735 = vld [vmem:[%s232 + $0xc] sm:$0xff]
          %v1736 = vld [vmem:[%s232 + $0x14] sm:$0xff]
          %v1737 = vld [vmem:[%s232 + $0x1c] sm:$0xff]
          %1742 = vst [vmem:[#allocation1] ss:$2 sm:$0xff] %v1734
          %s1743 = scalar_lea.vmem [#allocation1], 16
          %1744 = vst [vmem:[%s1743] ss:$2 sm:$0xff] %v1735
          %s1745 = scalar_lea.vmem [#allocation1], 32
          %1746 = vst [vmem:[%s1745] ss:$2 sm:$0xff] %v1736
          %s1747 = scalar_lea.vmem [#allocation1], 48
          %1748 = vst [vmem:[%s1747] ss:$2 sm:$0xff] %v1737
          %v1749 = vld.sshfl [vmem:[#allocation1] sm:$0xff pattern:$0x75316420]
          %v1750 = vld.sshfl [vmem:[#allocation1 + $0x8] sm:$0xff pattern:$0x75316420]
          %v1751 = vld.sshfl [vmem:[#allocation1 + $0x10] sm:$0xff pattern:$0x75316420]
          %v1752 = vld.sshfl [vmem:[#allocation1 + $0x18] sm:$0xff pattern:$0x75316420]
          %v1753 = vld.sshfl [vmem:[#allocation1 + $0x20] sm:$0xff pattern:$0x75316420]
          %v1754 = vld.sshfl [vmem:[#allocation1 + $0x28] sm:$0xff pattern:$0x75316420]
          %v1755 = vld.sshfl [vmem:[#allocation1 + $0x30] sm:$0xff pattern:$0x75316420]
          %v1756 = vld.sshfl [vmem:[#allocation1 + $0x38] sm:$0xff pattern:$0x75316420]
          %1757 = vrot.lane.b32.xlu0 %v1749, 36
          %v1758 = vpop.permute.xlu0 %1757
          %1759 = vrot.lane.b32.xlu0 %v1750, 36
          %v1760 = vpop.permute.xlu0 %1759
          %1761 = vrot.lane.b32.xlu0 %v1751, 36
          %v1762 = vpop.permute.xlu0 %1761
          %1763 = vrot.lane.b32.xlu0 %v1752, 36
          %v1764 = vpop.permute.xlu0 %1763
          %1765 = vrot.lane.b32.xlu0 %v1753, 36
          %v1766 = vpop.permute.xlu0 %1765
          %1767 = vrot.lane.b32.xlu0 %v1754, 36
          %v1768 = vpop.permute.xlu0 %1767
          %1769 = vrot.lane.b32.xlu0 %v1755, 36
          %v1770 = vpop.permute.xlu0 %1769
          %1771 = vrot.lane.b32.xlu0 %v1756, 36
          %v1772 = vpop.permute.xlu0 %1771
          %vm1773 = vcmask 293888
          %v1774 = vsel %vm1773, %v1758, %v1760
          %v1775 = vsel %vm1773, %v1760, %v1762
          %v1776 = vsel %vm1773, %v1762, %v1764
          %v1777 = vsel %vm1773, %v1764, %v1766
          %v1778 = vsel %vm1773, %v1766, %v1768
          %v1779 = vsel %vm1773, %v1768, %v1770
          %v1780 = vsel %vm1773, %v1770, %v1772
          %1788 = vst [vmem:[#allocation2 + $0x2a0] sm:$0xf] %v1774
          %1789 = vst [vmem:[#allocation2 + $0x2a8] sm:$0xf] %v1775
          %1790 = vst [vmem:[#allocation2 + $0x2b0] sm:$0xf] %v1776
          %1791 = vst [vmem:[#allocation2 + $0x2b8] sm:$0xf] %v1777
          %1792 = vst [vmem:[#allocation2 + $0x2c0] sm:$0xf] %v1778
          %1793 = vst [vmem:[#allocation2 + $0x2c8] sm:$0xf] %v1779
          %1794 = vst [vmem:[#allocation2 + $0x2d0] sm:$0xf] %v1780
          %v1795 = vld [vmem:[%s232 + $0x4] sm:$0xff]
          %v1796 = vld [vmem:[%s232 + $0xc] sm:$0xff]
          %v1797 = vld [vmem:[%s232 + $0x14] sm:$0xff]
          %v1798 = vld [vmem:[%s232 + $0x1c] sm:$0xff]
          %s1803 = scalar_lea.vmem [#allocation1], 1
          %1804 = vst [vmem:[%s1803] ss:$2 sm:$0xff] %v1795
          %s1805 = scalar_lea.vmem [#allocation1], 17
          %1806 = vst [vmem:[%s1805] ss:$2 sm:$0xff] %v1796
          %s1807 = scalar_lea.vmem [#allocation1], 33
          %1808 = vst [vmem:[%s1807] ss:$2 sm:$0xff] %v1797
          %s1809 = scalar_lea.vmem [#allocation1], 49
          %1810 = vst [vmem:[%s1809] ss:$2 sm:$0xff] %v1798
          %v1811 = vld.sshfl [vmem:[#allocation1] sm:$0xff pattern:$0x75316420]
          %v1812 = vld.sshfl [vmem:[#allocation1 + $0x8] sm:$0xff pattern:$0x75316420]
          %v1813 = vld.sshfl [vmem:[#allocation1 + $0x10] sm:$0xff pattern:$0x75316420]
          %v1814 = vld.sshfl [vmem:[#allocation1 + $0x18] sm:$0xff pattern:$0x75316420]
          %v1815 = vld.sshfl [vmem:[#allocation1 + $0x20] sm:$0xff pattern:$0x75316420]
          %v1816 = vld.sshfl [vmem:[#allocation1 + $0x28] sm:$0xff pattern:$0x75316420]
          %v1817 = vld.sshfl [vmem:[#allocation1 + $0x30] sm:$0xff pattern:$0x75316420]
          %v1818 = vld.sshfl [vmem:[#allocation1 + $0x38] sm:$0xff pattern:$0x75316420]
          %1819 = vrot.lane.b32.xlu0 %v1811, 35
          %v1820 = vpop.permute.xlu0 %1819
          %1821 = vrot.lane.b32.xlu0 %v1812, 35
          %v1822 = vpop.permute.xlu0 %1821
          %1823 = vrot.lane.b32.xlu0 %v1813, 35
          %v1824 = vpop.permute.xlu0 %1823
          %1825 = vrot.lane.b32.xlu0 %v1814, 35
          %v1826 = vpop.permute.xlu0 %1825
          %1827 = vrot.lane.b32.xlu0 %v1815, 35
          %v1828 = vpop.permute.xlu0 %1827
          %1829 = vrot.lane.b32.xlu0 %v1816, 35
          %v1830 = vpop.permute.xlu0 %1829
          %1831 = vrot.lane.b32.xlu0 %v1817, 35
          %v1832 = vpop.permute.xlu0 %1831
          %1833 = vrot.lane.b32.xlu0 %v1818, 35
          %v1834 = vpop.permute.xlu0 %1833
          %vm1835 = vcmask 285696
          %v1836 = vsel %vm1835, %v1820, %v1822
          %v1837 = vsel %vm1835, %v1822, %v1824
          %v1838 = vsel %vm1835, %v1824, %v1826
          %v1839 = vsel %vm1835, %v1826, %v1828
          %v1840 = vsel %vm1835, %v1828, %v1830
          %v1841 = vsel %vm1835, %v1830, %v1832
          %v1842 = vsel %vm1835, %v1832, %v1834
          %1850 = vst [vmem:[#allocation2 + $0x2a0] sm:$0xf0] %v1836
          %1851 = vst [vmem:[#allocation2 + $0x2a8] sm:$0xf0] %v1837
          %1852 = vst [vmem:[#allocation2 + $0x2b0] sm:$0xf0] %v1838
          %1853 = vst [vmem:[#allocation2 + $0x2b8] sm:$0xf0] %v1839
          %1854 = vst [vmem:[#allocation2 + $0x2c0] sm:$0xf0] %v1840
          %1855 = vst [vmem:[#allocation2 + $0x2c8] sm:$0xf0] %v1841
          %1856 = vst [vmem:[#allocation2 + $0x2d0] sm:$0xf0] %v1842
          %v1857 = vld [vmem:[%s232 + $0x4] sm:$0xff]
          %v1858 = vld [vmem:[%s232 + $0xc] sm:$0xff]
          %v1859 = vld [vmem:[%s232 + $0x14] sm:$0xff]
          %v1860 = vld [vmem:[%s232 + $0x1c] sm:$0xff]
          %1865 = vst [vmem:[#allocation1] ss:$2 sm:$0xff] %v1857
          %s1866 = scalar_lea.vmem [#allocation1], 16
          %1867 = vst [vmem:[%s1866] ss:$2 sm:$0xff] %v1858
          %s1868 = scalar_lea.vmem [#allocation1], 32
          %1869 = vst [vmem:[%s1868] ss:$2 sm:$0xff] %v1859
          %s1870 = scalar_lea.vmem [#allocation1], 48
          %1871 = vst [vmem:[%s1870] ss:$2 sm:$0xff] %v1860
          %v1872 = vld.sshfl [vmem:[#allocation1] sm:$0xff pattern:$0x75316420]
          %v1873 = vld.sshfl [vmem:[#allocation1 + $0x8] sm:$0xff pattern:$0x75316420]
          %v1874 = vld.sshfl [vmem:[#allocation1 + $0x10] sm:$0xff pattern:$0x75316420]
          %v1875 = vld.sshfl [vmem:[#allocation1 + $0x18] sm:$0xff pattern:$0x75316420]
          %v1876 = vld.sshfl [vmem:[#allocation1 + $0x20] sm:$0xff pattern:$0x75316420]
          %v1877 = vld.sshfl [vmem:[#allocation1 + $0x28] sm:$0xff pattern:$0x75316420]
          %v1878 = vld.sshfl [vmem:[#allocation1 + $0x30] sm:$0xff pattern:$0x75316420]
          %v1879 = vld.sshfl [vmem:[#allocation1 + $0x38] sm:$0xff pattern:$0x75316420]
          %1880 = vrot.lane.b32.xlu0 %v1872, 34
          %v1881 = vpop.permute.xlu0 %1880
          %1882 = vrot.lane.b32.xlu0 %v1873, 34
          %v1883 = vpop.permute.xlu0 %1882
          %1884 = vrot.lane.b32.xlu0 %v1874, 34
          %v1885 = vpop.permute.xlu0 %1884
          %1886 = vrot.lane.b32.xlu0 %v1875, 34
          %v1887 = vpop.permute.xlu0 %1886
          %1888 = vrot.lane.b32.xlu0 %v1876, 34
          %v1889 = vpop.permute.xlu0 %1888
          %1890 = vrot.lane.b32.xlu0 %v1877, 34
          %v1891 = vpop.permute.xlu0 %1890
          %1892 = vrot.lane.b32.xlu0 %v1878, 34
          %v1893 = vpop.permute.xlu0 %1892
          %1894 = vrot.lane.b32.xlu0 %v1879, 34
          %v1895 = vpop.permute.xlu0 %1894
          %vm1896 = vcmask 277504
          %v1897 = vsel %vm1896, %v1881, %v1883
          %v1898 = vsel %vm1896, %v1883, %v1885
          %v1899 = vsel %vm1896, %v1885, %v1887
          %v1900 = vsel %vm1896, %v1887, %v1889
          %v1901 = vsel %vm1896, %v1889, %v1891
          %v1902 = vsel %vm1896, %v1891, %v1893
          %v1903 = vsel %vm1896, %v1893, %v1895
          %1911 = vst [vmem:[#allocation2 + $0x2d8] sm:$0xf] %v1897
          %1912 = vst [vmem:[#allocation2 + $0x2e0] sm:$0xf] %v1898
          %1913 = vst [vmem:[#allocation2 + $0x2e8] sm:$0xf] %v1899
          %1914 = vst [vmem:[#allocation2 + $0x2f0] sm:$0xf] %v1900
          %1915 = vst [vmem:[#allocation2 + $0x2f8] sm:$0xf] %v1901
          %1916 = vst [vmem:[#allocation2 + $0x300] sm:$0xf] %v1902
          %1917 = vst [vmem:[#allocation2 + $0x308] sm:$0xf] %v1903
        $region48: #{tpu_custom_call.1} parent=35 // pred_fallthru
          _
        %v1918 = vld [vmem:[%s274] sm:$0xff]
        %v1919 = vld [vmem:[#allocation2] sm:$0xff]
        %v1920 = vld [vmem:[#allocation2 + $0x8] sm:$0xff]
        %v1921 = vld [vmem:[#allocation2 + $0x10] sm:$0xff]
        %v1922 = vld [vmem:[#allocation2 + $0x18] sm:$0xff]
        %v1923 = vld [vmem:[#allocation2 + $0x20] sm:$0xff]
        %v1924 = vld [vmem:[#allocation2 + $0x28] sm:$0xff]
        %v1925 = vld [vmem:[#allocation2 + $0x30] sm:$0xff]
        %v1926 = vld [vmem:[#allocation2 + $0x38] sm:$0xff]
        %v1927 = vld [vmem:[#allocation2 + $0x40] sm:$0xff]
        %v1928 = vld [vmem:[#allocation2 + $0x48] sm:$0xff]
        %v1929 = vld [vmem:[#allocation2 + $0x50] sm:$0xff]
        %v1930 = vld [vmem:[#allocation2 + $0x58] sm:$0xff]
        %v1931 = vld [vmem:[#allocation2 + $0x60] sm:$0xff]
        %v1932 = vld [vmem:[#allocation2 + $0x68] sm:$0xff]
        %v1933 = vld [vmem:[#allocation2 + $0x70] sm:$0xff]
        %v1934 = vld [vmem:[#allocation2 + $0x78] sm:$0xff]
        %v1935 = vld [vmem:[#allocation2 + $0x80] sm:$0xff]
        %v1936 = vld [vmem:[#allocation2 + $0x88] sm:$0xff]
        %v1937 = vld [vmem:[#allocation2 + $0x90] sm:$0xff]
        %v1938 = vld [vmem:[#allocation2 + $0x98] sm:$0xff]
        %v1939 = vld [vmem:[#allocation2 + $0xa0] sm:$0xff]
        %v1940 = vld [vmem:[#allocation2 + $0xa8] sm:$0xff]
        %v1941 = vld [vmem:[#allocation2 + $0xb0] sm:$0xff]
        %v1942 = vld [vmem:[#allocation2 + $0xb8] sm:$0xff]
        %v1943 = vld [vmem:[#allocation2 + $0xc0] sm:$0xff]
        %v1944 = vld [vmem:[#allocation2 + $0xc8] sm:$0xff]
        %v1945 = vld [vmem:[#allocation2 + $0xd0] sm:$0xff]
        %v1946 = vld [vmem:[#allocation2 + $0xd8] sm:$0xff]
        %v1947 = vld [vmem:[#allocation2 + $0xe0] sm:$0xff]
        %v1948 = vld [vmem:[#allocation2 + $0xe8] sm:$0xff]
        %v1949 = vld [vmem:[#allocation2 + $0xf0] sm:$0xff]
        %v1950 = vld [vmem:[#allocation2 + $0xf8] sm:$0xff]
        %v1951 = vld [vmem:[#allocation2 + $0x100] sm:$0xff]
        %v1952 = vld [vmem:[#allocation2 + $0x108] sm:$0xff]
        %v1953 = vld [vmem:[#allocation2 + $0x110] sm:$0xff]
        %v1954 = vld [vmem:[#allocation2 + $0x118] sm:$0xff]
        %v1955 = vld [vmem:[#allocation2 + $0x120] sm:$0xff]
        %v1956 = vld [vmem:[#allocation2 + $0x128] sm:$0xff]
        %v1957 = vld [vmem:[#allocation2 + $0x130] sm:$0xff]
        %v1958 = vld [vmem:[#allocation2 + $0x138] sm:$0xff]
        %v1959 = vld [vmem:[#allocation2 + $0x140] sm:$0xff]
        %v1960 = vld [vmem:[#allocation2 + $0x148] sm:$0xff]
        %v1961 = vld [vmem:[#allocation2 + $0x150] sm:$0xff]
        %v1962 = vld [vmem:[#allocation2 + $0x158] sm:$0xff]
        %v1963 = vld [vmem:[#allocation2 + $0x160] sm:$0xff]
        %v1964 = vld [vmem:[#allocation2 + $0x168] sm:$0xff]
        %v1965 = vld [vmem:[#allocation2 + $0x170] sm:$0xff]
        %v1966 = vld [vmem:[#allocation2 + $0x178] sm:$0xff]
        %v1967 = vld [vmem:[#allocation2 + $0x180] sm:$0xff]
        %v1968 = vld [vmem:[#allocation2 + $0x188] sm:$0xff]
        %v1969 = vld [vmem:[#allocation2 + $0x190] sm:$0xff]
        %v1970 = vld [vmem:[#allocation2 + $0x198] sm:$0xff]
        %v1971 = vld [vmem:[#allocation2 + $0x1a0] sm:$0xff]
        %v1972 = vld [vmem:[#allocation2 + $0x1a8] sm:$0xff]
        %v1973 = vld [vmem:[#allocation2 + $0x1b0] sm:$0xff]
        %v1974 = vld [vmem:[#allocation2 + $0x1b8] sm:$0xff]
        %v1975 = vld [vmem:[#allocation2 + $0x1c0] sm:$0xff]
        %v1976 = vld [vmem:[#allocation2 + $0x1c8] sm:$0xff]
        %v1977 = vld [vmem:[#allocation2 + $0x1d0] sm:$0xff]
        %v1978 = vld [vmem:[#allocation2 + $0x1d8] sm:$0xff]
        %v1979 = vld [vmem:[#allocation2 + $0x1e0] sm:$0xff]
        %v1980 = vld [vmem:[#allocation2 + $0x1e8] sm:$0xff]
        %v1981 = vld [vmem:[#allocation2 + $0x1f0] sm:$0xff]
        %v1982 = vld [vmem:[#allocation2 + $0x1f8] sm:$0xff]
        %v1983 = vld [vmem:[#allocation2 + $0x200] sm:$0xff]
        %v1984 = vld [vmem:[#allocation2 + $0x208] sm:$0xff]
        %v1985 = vld [vmem:[#allocation2 + $0x210] sm:$0xff]
        %v1986 = vld [vmem:[#allocation2 + $0x218] sm:$0xff]
        %v1987 = vld [vmem:[#allocation2 + $0x220] sm:$0xff]
        %v1988 = vld [vmem:[#allocation2 + $0x228] sm:$0xff]
        %v1989 = vld [vmem:[#allocation2 + $0x230] sm:$0xff]
        %v1990 = vld [vmem:[#allocation2 + $0x238] sm:$0xff]
        %v1991 = vld [vmem:[#allocation2 + $0x240] sm:$0xff]
        %v1992 = vld [vmem:[#allocation2 + $0x248] sm:$0xff]
        %v1993 = vld [vmem:[#allocation2 + $0x250] sm:$0xff]
        %v1994 = vld [vmem:[#allocation2 + $0x258] sm:$0xff]
        %v1995 = vld [vmem:[#allocation2 + $0x260] sm:$0xff]
        %v1996 = vld [vmem:[#allocation2 + $0x268] sm:$0xff]
        %v1997 = vld [vmem:[#allocation2 + $0x270] sm:$0xff]
        %v1998 = vld [vmem:[#allocation2 + $0x278] sm:$0xff]
        %v1999 = vld [vmem:[#allocation2 + $0x280] sm:$0xff]
        %v2000 = vld [vmem:[#allocation2 + $0x288] sm:$0xff]
        %v2001 = vld [vmem:[#allocation2 + $0x290] sm:$0xff]
        %v2002 = vld [vmem:[#allocation2 + $0x298] sm:$0xff]
        %v2003 = vld [vmem:[#allocation2 + $0x2a0] sm:$0xff]
        %v2004 = vld [vmem:[#allocation2 + $0x2a8] sm:$0xff]
        %v2005 = vld [vmem:[#allocation2 + $0x2b0] sm:$0xff]
        %v2006 = vld [vmem:[#allocation2 + $0x2b8] sm:$0xff]
        %v2007 = vld [vmem:[#allocation2 + $0x2c0] sm:$0xff]
        %v2008 = vld [vmem:[#allocation2 + $0x2c8] sm:$0xff]
        %v2009 = vld [vmem:[#allocation2 + $0x2d0] sm:$0xff]
        %v2010 = vld [vmem:[#allocation2 + $0x2d8] sm:$0xf]
        %v2011 = vld [vmem:[#allocation2 + $0x2e0] sm:$0xf]
        %v2012 = vld [vmem:[#allocation2 + $0x2e8] sm:$0xf]
        %v2013 = vld [vmem:[#allocation2 + $0x2f0] sm:$0xf]
        %v2014 = vld [vmem:[#allocation2 + $0x2f8] sm:$0xf]
        %v2015 = vld [vmem:[#allocation2 + $0x300] sm:$0xf]
        %v2016 = vld [vmem:[#allocation2 + $0x308] sm:$0xf]
        %v2017 = vld [vmem:[%s278] sm:$0xff]
        %2019 = vset.pattern.permute.xlu0 0
        %2020 = vperm.xlu0 %2019, %v2017
        %v2021 = vpop.permute.xlu0 %2020
        %vm2023 = vcmask 883712
        %v2025 = vsel %vm2023, %v1918, 0
        %vm2027 = vcmask 1043456
        %v2029 = vsel %vm2027, %v2010, 0
        %v2032 = vsel %vm2027, %v2011, 0
        %v2035 = vsel %vm2027, %v2012, 0
        %v2038 = vsel %vm2027, %v2013, 0
        %v2041 = vsel %vm2027, %v2014, 0
        %v2044 = vsel %vm2027, %v2015, 0
        %v2047 = vsel %vm2027, %v2016, 0
        %2049 = vmatpush.msra.mxu0 0.0
        %2050 = vmatpush.msra.mxu0 0.0
        %2051 = vmatpush.msra.mxu0 %v2029
        %2052 = vmatpush.msra.mxu0 %v2003
        %2053 = vmatpush.msra.mxu0 %v1996
        %2054 = vmatpush.msra.mxu0 %v1989
        %2055 = vmatpush.msra.mxu0 %v1982
        %2056 = vmatpush.msra.mxu0 %v1975
        %2057 = vmatpush.msra.mxu0 %v1968
        %2058 = vmatpush.msra.mxu0 %v1961
        %2059 = vmatpush.msra.mxu0 %v1954
        %2060 = vmatpush.msra.mxu0 %v1947
        %2061 = vmatpush.msra.mxu0 %v1940
        %2062 = vmatpush.msra.mxu0 %v1933
        %2063 = vmatpush.msra.mxu0 %v1926
        %2064 = vmatpush.msra.mxu0 %v1919
        %2065 = vmatmul.f32.gmra.mxu0 %v2025
        %v2066 = vpop.f32.mrf.mxu0
        %v2067 = vadd.f32 %v2021, %v2066
        %2068 = vdwg.mxu0
        %2069 = vmatpush.msra.mxu0 0.0
        %2070 = vmatpush.msra.mxu0 0.0
        %2071 = vmatpush.msra.mxu0 %v2032
        %2072 = vmatpush.msra.mxu0 %v2004
        %2073 = vmatpush.msra.mxu0 %v1997
        %2074 = vmatpush.msra.mxu0 %v1990
        %2075 = vmatpush.msra.mxu0 %v1983
        %2076 = vmatpush.msra.mxu0 %v1976
        %2077 = vmatpush.msra.mxu0 %v1969
        %2078 = vmatpush.msra.mxu0 %v1962
        %2079 = vmatpush.msra.mxu0 %v1955
        %2080 = vmatpush.msra.mxu0 %v1948
        %2081 = vmatpush.msra.mxu0 %v1941
        %2082 = vmatpush.msra.mxu0 %v1934
        %2083 = vmatpush.msra.mxu0 %v1927
        %2084 = vmatpush.msra.mxu0 %v1920
        %2085 = vmatmul.f32.gmra.mxu0 %v2025
        %v2086 = vpop.f32.mrf.mxu0
        %v2087 = vadd.f32 %v2021, %v2086
        %2088 = vdwg.mxu0
        %2089 = vmatpush.msra.mxu0 0.0
        %2090 = vmatpush.msra.mxu0 0.0
        %2091 = vmatpush.msra.mxu0 %v2035
        %2092 = vmatpush.msra.mxu0 %v2005
        %2093 = vmatpush.msra.mxu0 %v1998
        %2094 = vmatpush.msra.mxu0 %v1991
        %2095 = vmatpush.msra.mxu0 %v1984
        %2096 = vmatpush.msra.mxu0 %v1977
        %2097 = vmatpush.msra.mxu0 %v1970
        %2098 = vmatpush.msra.mxu0 %v1963
        %2099 = vmatpush.msra.mxu0 %v1956
        %2100 = vmatpush.msra.mxu0 %v1949
        %2101 = vmatpush.msra.mxu0 %v1942
        %2102 = vmatpush.msra.mxu0 %v1935
        %2103 = vmatpush.msra.mxu0 %v1928
        %2104 = vmatpush.msra.mxu0 %v1921
        %2105 = vmatmul.f32.gmra.mxu0 %v2025
        %v2106 = vpop.f32.mrf.mxu0
        %v2107 = vadd.f32 %v2021, %v2106
        %2108 = vdwg.mxu0
        %2109 = vmatpush.msra.mxu0 0.0
        %2110 = vmatpush.msra.mxu0 0.0
        %2111 = vmatpush.msra.mxu0 %v2038
        %2112 = vmatpush.msra.mxu0 %v2006
        %2113 = vmatpush.msra.mxu0 %v1999
        %2114 = vmatpush.msra.mxu0 %v1992
        %2115 = vmatpush.msra.mxu0 %v1985
        %2116 = vmatpush.msra.mxu0 %v1978
        %2117 = vmatpush.msra.mxu0 %v1971
        %2118 = vmatpush.msra.mxu0 %v1964
        %2119 = vmatpush.msra.mxu0 %v1957
        %2120 = vmatpush.msra.mxu0 %v1950
        %2121 = vmatpush.msra.mxu0 %v1943
        %2122 = vmatpush.msra.mxu0 %v1936
        %2123 = vmatpush.msra.mxu0 %v1929
        %2124 = vmatpush.msra.mxu0 %v1922
        %2125 = vmatmul.f32.gmra.mxu0 %v2025
        %v2126 = vpop.f32.mrf.mxu0
        %v2127 = vadd.f32 %v2021, %v2126
        %2128 = vdwg.mxu0
        %2129 = vmatpush.msra.mxu0 0.0
        %2130 = vmatpush.msra.mxu0 0.0
        %2131 = vmatpush.msra.mxu0 %v2041
        %2132 = vmatpush.msra.mxu0 %v2007
        %2133 = vmatpush.msra.mxu0 %v2000
        %2134 = vmatpush.msra.mxu0 %v1993
        %2135 = vmatpush.msra.mxu0 %v1986
        %2136 = vmatpush.msra.mxu0 %v1979
        %2137 = vmatpush.msra.mxu0 %v1972
        %2138 = vmatpush.msra.mxu0 %v1965
        %2139 = vmatpush.msra.mxu0 %v1958
        %2140 = vmatpush.msra.mxu0 %v1951
        %2141 = vmatpush.msra.mxu0 %v1944
        %2142 = vmatpush.msra.mxu0 %v1937
        %2143 = vmatpush.msra.mxu0 %v1930
        %2144 = vmatpush.msra.mxu0 %v1923
        %2145 = vmatmul.f32.gmra.mxu0 %v2025
        %v2146 = vpop.f32.mrf.mxu0
        %v2147 = vadd.f32 %v2021, %v2146
        %2148 = vdwg.mxu0
        %2149 = vmatpush.msra.mxu0 0.0
        %2150 = vmatpush.msra.mxu0 0.0
        %2151 = vmatpush.msra.mxu0 %v2044
        %2152 = vmatpush.msra.mxu0 %v2008
        %2153 = vmatpush.msra.mxu0 %v2001
        %2154 = vmatpush.msra.mxu0 %v1994
        %2155 = vmatpush.msra.mxu0 %v1987
        %2156 = vmatpush.msra.mxu0 %v1980
        %2157 = vmatpush.msra.mxu0 %v1973
        %2158 = vmatpush.msra.mxu0 %v1966
        %2159 = vmatpush.msra.mxu0 %v1959
        %2160 = vmatpush.msra.mxu0 %v1952
        %2161 = vmatpush.msra.mxu0 %v1945
        %2162 = vmatpush.msra.mxu0 %v1938
        %2163 = vmatpush.msra.mxu0 %v1931
        %2164 = vmatpush.msra.mxu0 %v1924
        %2165 = vmatmul.f32.gmra.mxu0 %v2025
        %v2166 = vpop.f32.mrf.mxu0
        %v2167 = vadd.f32 %v2021, %v2166
        %2168 = vdwg.mxu0
        %2169 = vmatpush.msra.mxu0 0.0
        %2170 = vmatpush.msra.mxu0 0.0
        %2171 = vmatpush.msra.mxu0 %v2047
        %2172 = vmatpush.msra.mxu0 %v2009
        %2173 = vmatpush.msra.mxu0 %v2002
        %2174 = vmatpush.msra.mxu0 %v1995
        %2175 = vmatpush.msra.mxu0 %v1988
        %2176 = vmatpush.msra.mxu0 %v1981
        %2177 = vmatpush.msra.mxu0 %v1974
        %2178 = vmatpush.msra.mxu0 %v1967
        %2179 = vmatpush.msra.mxu0 %v1960
        %2180 = vmatpush.msra.mxu0 %v1953
        %2181 = vmatpush.msra.mxu0 %v1946
        %2182 = vmatpush.msra.mxu0 %v1939
        %2183 = vmatpush.msra.mxu0 %v1932
        %2184 = vmatpush.msra.mxu0 %v1925
        %2185 = vmatmul.f32.gmra.mxu0 %v2025
        %v2186 = vpop.f32.mrf.mxu0
        %v2187 = vadd.f32 %v2021, %v2186
        %2188 = vdwg.mxu0
        %v2189 = vmax.f32 %v2067, 0.0
        %v2190 = vmax.f32 %v2087, 0.0
        %v2191 = vmax.f32 %v2107, 0.0
        %v2192 = vmax.f32 %v2127, 0.0
        %v2193 = vmax.f32 %v2147, 0.0
        %v2194 = vmax.f32 %v2167, 0.0
        %v2195 = vmax.f32 %v2187, 0.0
        %v2196 = vld [vmem:[#allocation6] sm:$0xff]
        %v2198 = vperm.slane %v2196, 0
        %v2199 = vperm.slane %v2196, 1
        %v2200 = vperm.slane %v2196, 2
        %v2201 = vperm.slane %v2196, 3
        %v2202 = vperm.slane %v2196, 4
        %v2203 = vperm.slane %v2196, 5
        %v2204 = vperm.slane %v2196, 6
        %v2212 = vmul.f32 %v2189, %v2198
        %v2213 = vmul.f32 %v2190, %v2199
        %v2214 = vmul.f32 %v2191, %v2200
        %v2215 = vmul.f32 %v2192, %v2201
        %v2216 = vmul.f32 %v2193, %v2202
        %v2217 = vmul.f32 %v2194, %v2203
        %v2218 = vmul.f32 %v2195, %v2204
        %v2219 = vadd.f32 %v2212, %v2213
        %v2220 = vadd.f32 %v2219, %v2214
        %v2221 = vadd.f32 %v2220, %v2215
        %v2222 = vadd.f32 %v2221, %v2216
        %v2223 = vadd.f32 %v2222, %v2217
        %v2224 = vadd.f32 %v2223, %v2218
        %2225 = vadd.xlane.f32.xlu0 %v2224
        %v2226 = vpop.xlane.xlu0 %2225
        %v2227 = vmul.f32 %v2212, %v2189
        %v2228 = vmul.f32 %v2213, %v2190
        %v2229 = vmul.f32 %v2214, %v2191
        %v2230 = vmul.f32 %v2215, %v2192
        %v2231 = vmul.f32 %v2216, %v2193
        %v2232 = vmul.f32 %v2217, %v2194
        %v2233 = vmul.f32 %v2218, %v2195
        %v2234 = vadd.f32 %v2227, %v2228
        %v2235 = vadd.f32 %v2234, %v2229
        %v2236 = vadd.f32 %v2235, %v2230
        %v2237 = vadd.f32 %v2236, %v2231
        %v2238 = vadd.f32 %v2237, %v2232
        %v2239 = vadd.f32 %v2238, %v2233
        %2240 = vadd.xlane.f32.xlu0 %v2239
        %v2241 = vpop.xlane.xlu0 %2240
        %v2242 = vmul.f32 %v2226, 0.001953125
        %v2243 = vmul.f32 %v2241, 0.001953125
        %v2244 = vmul.f32 %v2242, %v2242
        %v2245 = vsub.f32 %v2243, %v2244
        %v2246 = vadd.f32 %v2245, 1e-05
        %v2247 = vrsqrt.pop %v2246
        %v2248 = vmul.f32 %v2247, %v2246
        %v2249 = vmul.f32 %v2248, %v2247
        %v2250 = vmul.f32 0.5, %v2249
        %v2251 = vsub.f32 1.5, %v2250
        %v2252 = vmul.f32 %v2247, %v2251
        %vm2253 = vweird.f32 %v2246
        %vm2254 = vweird.f32 %v2247
        %vm2255 = vmor %vm2253, %vm2254
        %v2256 = vsel %vm2255, %v2247, %v2252
        %v2257 = vsub.f32 0.0, %v2242
        %v2258 = vmul.f32 %v2257, %v2256
        %v2259 = vmul.f32 %v2189, %v2256
        %v2260 = vmul.f32 %v2190, %v2256
        %v2261 = vmul.f32 %v2191, %v2256
        %v2262 = vmul.f32 %v2192, %v2256
        %v2263 = vmul.f32 %v2193, %v2256
        %v2264 = vmul.f32 %v2194, %v2256
        %v2265 = vmul.f32 %v2195, %v2256
        %v2266 = vadd.f32 %v2259, %v2258
        %v2267 = vadd.f32 %v2260, %v2258
        %v2268 = vadd.f32 %v2261, %v2258
        %v2269 = vadd.f32 %v2262, %v2258
        %v2270 = vadd.f32 %v2263, %v2258
        %v2271 = vadd.f32 %v2264, %v2258
        %v2272 = vadd.f32 %v2265, %v2258
        %2273 = vst [vmem:[%s270] sm:$0xff] %v2266
        %2274 = vst [vmem:[%s270 + $0x8] sm:$0xff] %v2267
        %2275 = vst [vmem:[%s270 + $0x10] sm:$0xff] %v2268
        %2276 = vst [vmem:[%s270 + $0x18] sm:$0xff] %v2269
        %2277 = vst [vmem:[%s270 + $0x20] sm:$0xff] %v2270
        %2278 = vst [vmem:[%s270 + $0x28] sm:$0xff] %v2271
        %2279 = vst [vmem:[%s270 + $0x30] sm:$0xff] %v2272
        %s2280 = sand.u32 %s143, 1
        %s2281 = scalar_lea.sflag [#allocation5], %s2280
        %s2282 = sand.u32 %s143, 1
        %s2283 = smul.addr %s2282, 56
        %s2284 = scalar_lea.vmem [#allocation8], %s2283
        // Predicated region
        $region49: #{tpu_custom_call.1} parent=35 // pred_check
          %p2285 = pneg %p153
        $region50: #{tpu_custom_call.1} parent=35 // pred_check_branch
          %2287 = sbr.rel (%p2285) target = $region52
        $region51: #{tpu_custom_call.1} parent=35 // pred_region
          %2289 = vsyncadd %s2281, 0
          %s2290 = smul.addr %s27, 7
          %s2291 = smul.addr %s26, 7
          %s2292 = sadd.s32 %s2290, %s2291
          %s2293 = smul.addr %s2292, 8
          %s2294 = scalar_lea.hbm %s4, %s2293
          %s2296 = sshll.u32 %s2284, 4
          %s2297 = int_to_ptr.vmem [resolvable:$true] %s2296
          %s2298 = sshll.u32 %s2294, 4
          %s2299 = int_to_ptr.hbm [resolvable:$true] %s2298
          %2301 = dma.vmem_to_hbm [thread:$0]  %s2297, 896, %s2299, %s2281
        $region52: #{tpu_custom_call.1} parent=35 // pred_fallthru
          _
      $region36: #{tpu_custom_call.1} parent=5 // pred_fallthru
        _
      %p2302 = scmp.le.s32.totalorder 2, %s17
      // Predicated region
      $region53: #{tpu_custom_call.1} parent=5 // pred_check
        %p2303 = pneg %p2302
      $region54: #{tpu_custom_call.1} parent=5 // pred_check_branch
        %2305 = sbr.rel (%p2303) target = $region56
      $region55: #{tpu_custom_call.1} parent=5 // pred_region
        %s2306 = ssub.s32 %s17, 2
        // Predicated region
        $region57: #{tpu_custom_call.1} parent=55 // pred_check
          %p2307 = pneg %p159
        $region58: #{tpu_custom_call.1} parent=55 // pred_check_branch
          %2309 = sbr.rel (%p2307) target = $region60
        $region59: #{tpu_custom_call.1} parent=55 // pred_region
          %s2310 = sand.u32 %s144, 1
          %s2311 = scalar_lea.sflag [#allocation5], %s2310
          %s2312 = sand.u32 %s144, 1
          %s2313 = smul.addr %s2312, 56
          %s2314 = scalar_lea.vmem [#allocation8], %s2313
          %2316 = dma.done %s2311, 896
        $region60: #{tpu_custom_call.1} parent=55 // pred_fallthru
          _
      $region56: #{tpu_custom_call.1} parent=5 // pred_fallthru
        _
    $region6: #{tpu_custom_call.1} parent=1 // loop_footer
      %s21 = sadd.s32 1, %s17
    $region7: #{tpu_custom_call.1} parent=1 // loop_footer_branch
      %16 = sbr.rel target = $region3
    $region8: #{tpu_custom_call.1} parent=1 // loop_exit
      _
    %2317 = vsyncpa [#allocation4], 1
    %s2318 = scalar_lea.sflag [#allocation4], 1
    %2319 = vsyncpa %s2318, 1
    %2320 = vsyncpa [#allocation7], 1
    %2321 = vsyncpa [#allocation5], 1
    %s2322 = scalar_lea.sflag [#allocation5], 1
    %2323 = vsyncpa %s2322, 1

</llo_original>
